<compile_context>
chip_gen: v7x
topology: tpu7x:2x2x1
jax: 0.10.0
libtpu: 0.0.40
codegen_flags: <defaults>
</compile_context>

<pallas_src>
import functools

import jax
import jax.numpy as jnp
from jax import lax
from jax.experimental import pallas as pl
from jax.experimental.pallas import tpu as pltpu


def lstm_maxpool_fc_kernel(ids_ref, emb_ref, wih_ref, whh_ref, b_ref,
                           fcw_ref, fcb_ref, out_ref, *, seq_len, batch,
                           hidden):
    """Embedding gather + 1-layer LSTM + max-pool over time + Linear + sigmoid.

    ids_ref : (T*B, 1) int32   time-major flattened token ids
    emb_ref : (Vpad, E)        embedding table, rows >= V are zero
    wih_ref : (E, 4H)          input->gates weights (gate order i,f,g,o)
    whh_ref : (4H, 4H)         hidden->gates weights, rows [H:4H) are zero
    b_ref   : (1, 4H)          combined bias (b_ih + b_hh)
    fcw_ref : (4H, 1)          final linear weight, rows [H:4H) are zero
    fcb_ref : (1, 1)           final linear bias
    out_ref : (B, 1)           sigmoid(fc(max_t h_t))
    """
    T, B, H = seq_len, batch, hidden
    G = 4 * H
    TB = T * B
    V = emb_ref.shape[0]

    # ---- Prologue (off the recurrent critical path) ------------------------
    # Embedding gather as a one-hot matmul: one MXU push instead of a
    # wrapper-side XLA gather + transpose + HBM round trip of the activations.
    ids = ids_ref[...]                                          # (TB, 1) i32
    vocab_iota = lax.broadcasted_iota(jnp.int32, (TB, V), 1)
    onehot = jnp.where(vocab_iota == ids, 1.0, 0.0).astype(jnp.float32)
    x = jnp.dot(onehot, emb_ref[...],
                preferred_element_type=jnp.float32)             # (TB, E)

    # Hoisted input projection + bias: one well-occupied (TB, E) x (E, 4H)
    # matmul; the (1,4H)->(TB,4H) bias broadcast happens exactly once.
    x_proj = jnp.dot(x, wih_ref[...],
                     preferred_element_type=jnp.float32) + b_ref[...]

    whh = whh_ref[...]                      # (4H, 4H), loaded once, rows H: = 0

    # ---- Recurrence: fully unrolled, vreg-resident state --------------------
    h = jnp.zeros((B, G), jnp.float32)      # lanes [0,H) valid, rest harmless
    c = jnp.zeros((B, G), jnp.float32)
    mx = jnp.full((B, G), -jnp.inf, jnp.float32)

    for t in range(T):
        # per-step critical path: one (B,4H)x(4H,4H) matmul + one add
        gates = x_proj[t * B:(t + 1) * B, :] + jnp.dot(
            h, whh, preferred_element_type=jnp.float32)          # (B, 4H)
        sig = jax.nn.sigmoid(gates)          # full-vreg EUP: [i, f, ., o]
        th = jnp.tanh(gates)                 # full-vreg EUP: [., ., g, .]
        f_g = pltpu.roll(sig, shift=3 * H, axis=1)   # f -> lanes [0, H)
        g_g = pltpu.roll(th, shift=2 * H, axis=1)    # g -> lanes [0, H)
        o_g = pltpu.roll(sig, shift=H, axis=1)       # o -> lanes [0, H)
        c = f_g * c + sig * g_g              # lanes [0,H) carry the real cell
        h = o_g * jnp.tanh(c)                # lanes [H,4H) stay bounded junk
        mx = jnp.maximum(mx, h)              # mode == 'max'

    # ---- Epilogue: Linear + sigmoid (zero rows of fc_w kill junk lanes) -----
    logits = jnp.dot(mx, fcw_ref[...],
                     preferred_element_type=jnp.float32) + fcb_ref[...]
    out_ref[...] = jax.nn.sigmoid(logits)


@functools.partial(jax.jit, static_argnames=("hidden_dim",))
def lstm_forward(token_ids, emb_table, w_ih, w_hh, b, fc_w, fc_b, hidden_dim):
    """Full forward, everything (gather + LSTM + pool + fc) inside one kernel."""
    B, T = token_ids.shape
    H = hidden_dim
    G = 4 * H
    V, E = emb_table.shape

    # Tiny index / parameter prep (a few KiB; in practice done once at
    # parameter-prep time — kept here so the call takes module-shaped args).
    ids_tm = token_ids.astype(jnp.int32).T.reshape(T * B, 1)     # time-major
    V_pad = ((V + 127) // 128) * 128
    emb_pad = jnp.zeros((V_pad, E), jnp.float32).at[:V].set(emb_table)
    whh_pad = jnp.zeros((G, G), jnp.float32).at[:H].set(w_hh)
    fcw_pad = jnp.zeros((G, 1), jnp.float32).at[:H].set(fc_w)

    kernel = functools.partial(lstm_maxpool_fc_kernel,
                               seq_len=T, batch=B, hidden=H)
    out = pl.pallas_call(
        kernel,
        out_shape=jax.ShapeDtypeStruct((B, 1), jnp.float32),
        in_specs=[pl.BlockSpec(memory_space=pltpu.MemorySpace.VMEM)] * 7,
        out_specs=pl.BlockSpec(memory_space=pltpu.MemorySpace.VMEM),
    )(ids_tm, emb_pad, w_ih, whh_pad, b, fcw_pad, fc_b)

    # out.view(batch, -1)[:, -1]  ->  squeeze the single fc column
    return out[:, -1]


def reference_forward(token_ids, emb_table, w_ih, w_hh, b, fc_w, fc_b, H):
    """Pure-JAX reference matching PyTorch nn.LSTM (1 layer, uni, mode='max')."""
    x = emb_table[token_ids]                      # (B, T, E)
    B, T, _ = x.shape
    h = jnp.zeros((B, H), jnp.float32)
    c = jnp.zeros((B, H), jnp.float32)
    outs = []
    for t in range(T):
        gates = x[:, t, :] @ w_ih + h @ w_hh + b  # (B, 4H)
        i_g = jax.nn.sigmoid(gates[:, 0 * H:1 * H])
        f_g = jax.nn.sigmoid(gates[:, 1 * H:2 * H])
        g_g = jnp.tanh(gates[:, 2 * H:3 * H])
        o_g = jax.nn.sigmoid(gates[:, 3 * H:4 * H])
        c = f_g * c + i_g * g_g
        h = o_g * jnp.tanh(c)
        outs.append(h)
    lstm_out = jnp.stack(outs, axis=1)            # (B, T, H)
    pooled = jnp.max(lstm_out, axis=1)            # mode == 'max'
    logits = pooled @ fc_w + fc_b
    return jax.nn.sigmoid(logits)[:, -1]


if __name__ == "__main__":
    # Small, module-consistent shapes.
    B, T = 8, 8
    E, H = 128, 32
    VOCAB = 50

    key = jax.random.PRNGKey(0)
    k_emb, k_wih, k_whh, k_b, k_fcw, k_fcb, k_ids = jax.random.split(key, 7)

    # Deterministic synthetic parameters (shapes follow the module __init__).
    emb_table = jax.random.normal(k_emb, (VOCAB + 1, E), jnp.float32) * 0.1
    w_ih = jax.random.normal(k_wih, (E, 4 * H), jnp.float32) * 0.1
    w_hh = jax.random.normal(k_whh, (H, 4 * H), jnp.float32) * 0.1
    # b = b_ih + b_hh (PyTorch keeps both; their sum is what the cell sees).
    b = (jax.random.normal(k_b, (1, 4 * H), jnp.float32) * 0.1)
    fc_w = jax.random.normal(k_fcw, (H, 1), jnp.float32) * 0.1
    fc_b = jax.random.normal(k_fcb, (1, 1), jnp.float32) * 0.1

    token_ids = jax.random.randint(k_ids, (B, T), 0, VOCAB + 1, jnp.int32)

    out = lstm_forward(token_ids, emb_table, w_ih, w_hh, b, fc_w, fc_b,
                       hidden_dim=H)
    out = jax.block_until_ready(out)

    ref = reference_forward(token_ids, emb_table, w_ih, w_hh, b, fc_w, fc_b, H)
    assert out.shape == (B,)
    assert jnp.allclose(out, ref, rtol=1e-4, atol=1e-5), (out, ref)

    print("KERNEL_OK")
</pallas_src>

<mosaic_0001>
module attributes {stable_mosaic.version = 11 : i64} {
  func.func @lstm_maxpool_fc_kernel(%arg0: memref<64x1xi32, #tpu.memory_space<vmem>>, %arg1: memref<128x128xf32, #tpu.memory_space<vmem>>, %arg2: memref<128x128xf32, #tpu.memory_space<vmem>>, %arg3: memref<128x128xf32, #tpu.memory_space<vmem>>, %arg4: memref<1x128xf32, #tpu.memory_space<vmem>>, %arg5: memref<128x1xf32, #tpu.memory_space<vmem>>, %arg6: memref<1x1xf32, #tpu.memory_space<vmem>>, %arg7: memref<8x1xf32, #tpu.memory_space<vmem>>) attributes {dimension_semantics = [], scalar_prefetch = 0 : i64, scratch_operands = 0 : i64, tpu.core_type = #tpu.core_type<tc>} {
    %c0 = arith.constant 0 : index
    %c0_0 = arith.constant 0 : index
    %0 = vector.load %arg0[%c0, %c0_0] : memref<64x1xi32, #tpu.memory_space<vmem>>, vector<64x1xi32>
    %1 = tpu.iota {dimensions = array<i32: 1>} : vector<64x128xi32>
    %2 = vector.broadcast %0 : vector<64x1xi32> to vector<64x128xi32>
    %3 = arith.cmpi eq, %1, %2 : vector<64x128xi32>
    %cst = arith.constant 1.000000e+00 : f32
    %cst_1 = arith.constant 0.000000e+00 : f32
    %4 = vector.broadcast %cst : f32 to vector<64x128xf32>
    %5 = vector.broadcast %cst_1 : f32 to vector<64x128xf32>
    %6 = arith.select %3, %4, %5 : vector<64x128xi1>, vector<64x128xf32>
    %c0_2 = arith.constant 0 : index
    %c0_3 = arith.constant 0 : index
    %7 = vector.load %arg1[%c0_2, %c0_3] : memref<128x128xf32, #tpu.memory_space<vmem>>, vector<128x128xf32>
    %cst_4 = arith.constant dense<0.000000e+00> : vector<64x128xf32>
    %8 = tpu.matmul %6, %7, %cst_4 {dimension_numbers = #tpu.dot_dimension_numbers<[1], [0], [0], [1], [0, 0, 1, 1], [], []>} : vector<64x128xf32>, vector<128x128xf32>, vector<64x128xf32> -> vector<64x128xf32>
    %c0_5 = arith.constant 0 : index
    %c0_6 = arith.constant 0 : index
    %9 = vector.load %arg2[%c0_5, %c0_6] : memref<128x128xf32, #tpu.memory_space<vmem>>, vector<128x128xf32>
    %cst_7 = arith.constant dense<0.000000e+00> : vector<64x128xf32>
    %10 = tpu.matmul %8, %9, %cst_7 {dimension_numbers = #tpu.dot_dimension_numbers<[1], [0], [0], [1], [0, 0, 1, 1], [], []>} : vector<64x128xf32>, vector<128x128xf32>, vector<64x128xf32> -> vector<64x128xf32>
    %c0_8 = arith.constant 0 : index
    %c0_9 = arith.constant 0 : index
    %11 = vector.load %arg4[%c0_8, %c0_9] : memref<1x128xf32, #tpu.memory_space<vmem>>, vector<1x128xf32>
    %12 = vector.broadcast %11 : vector<1x128xf32> to vector<64x128xf32>
    %13 = arith.addf %10, %12 : vector<64x128xf32>
    %c0_10 = arith.constant 0 : index
    %c0_11 = arith.constant 0 : index
    %14 = vector.load %arg3[%c0_10, %c0_11] : memref<128x128xf32, #tpu.memory_space<vmem>>, vector<128x128xf32>
    %cst_12 = arith.constant 0.000000e+00 : f32
    %15 = vector.broadcast %cst_12 : f32 to vector<8x128xf32>
    %cst_13 = arith.constant 0.000000e+00 : f32
    %16 = vector.broadcast %cst_13 : f32 to vector<8x128xf32>
    %cst_14 = arith.constant 0xFF800000 : f32
    %17 = vector.broadcast %cst_14 : f32 to vector<8x128xf32>
    %18 = vector.extract_strided_slice %13 {offsets = [0, 0], sizes = [8, 128], strides = [1, 1]} : vector<64x128xf32> to vector<8x128xf32>
    %cst_15 = arith.constant dense<0.000000e+00> : vector<8x128xf32>
    %19 = tpu.matmul %15, %14, %cst_15 {dimension_numbers = #tpu.dot_dimension_numbers<[1], [0], [0], [1], [0, 0, 1, 1], [], []>} : vector<8x128xf32>, vector<128x128xf32>, vector<8x128xf32> -> vector<8x128xf32>
    %20 = arith.addf %18, %19 : vector<8x128xf32>
    %21 = arith.negf %20 : vector<8x128xf32>
    %22 = math.exp %21 : vector<8x128xf32>
    %cst_16 = arith.constant 1.000000e+00 : f32
    %23 = vector.broadcast %cst_16 : f32 to vector<8x128xf32>
    %24 = arith.addf %23, %22 : vector<8x128xf32>
    %25 = arith.divf %23, %24 : vector<8x128xf32>
    %26 = math.tanh %20 : vector<8x128xf32>
    %c96_i32 = arith.constant 96 : i32
    %27 = tpu.dynamic_rotate %25 by %c96_i32 dim 1 : vector<8x128xf32>, i32 -> vector<8x128xf32>
    %c64_i32 = arith.constant 64 : i32
    %28 = tpu.dynamic_rotate %26 by %c64_i32 dim 1 : vector<8x128xf32>, i32 -> vector<8x128xf32>
    %c32_i32 = arith.constant 32 : i32
    %29 = tpu.dynamic_rotate %25 by %c32_i32 dim 1 : vector<8x128xf32>, i32 -> vector<8x128xf32>
    %30 = arith.mulf %27, %16 : vector<8x128xf32>
    %31 = arith.mulf %25, %28 : vector<8x128xf32>
    %32 = arith.addf %30, %31 : vector<8x128xf32>
    %33 = math.tanh %32 : vector<8x128xf32>
    %34 = arith.mulf %29, %33 : vector<8x128xf32>
    %35 = arith.maximumf %17, %34 : vector<8x128xf32>
    %36 = vector.extract_strided_slice %13 {offsets = [8, 0], sizes = [8, 128], strides = [1, 1]} : vector<64x128xf32> to vector<8x128xf32>
    %cst_17 = arith.constant dense<0.000000e+00> : vector<8x128xf32>
    %37 = tpu.matmul %34, %14, %cst_17 {dimension_numbers = #tpu.dot_dimension_numbers<[1], [0], [0], [1], [0, 0, 1, 1], [], []>} : vector<8x128xf32>, vector<128x128xf32>, vector<8x128xf32> -> vector<8x128xf32>
    %38 = arith.addf %36, %37 : vector<8x128xf32>
    %39 = arith.negf %38 : vector<8x128xf32>
    %40 = math.exp %39 : vector<8x128xf32>
    %cst_18 = arith.constant 1.000000e+00 : f32
    %41 = vector.broadcast %cst_18 : f32 to vector<8x128xf32>
    %42 = arith.addf %41, %40 : vector<8x128xf32>
    %43 = arith.divf %41, %42 : vector<8x128xf32>
    %44 = math.tanh %38 : vector<8x128xf32>
    %c96_i32_19 = arith.constant 96 : i32
    %45 = tpu.dynamic_rotate %43 by %c96_i32_19 dim 1 : vector<8x128xf32>, i32 -> vector<8x128xf32>
    %c64_i32_20 = arith.constant 64 : i32
    %46 = tpu.dynamic_rotate %44 by %c64_i32_20 dim 1 : vector<8x128xf32>, i32 -> vector<8x128xf32>
    %c32_i32_21 = arith.constant 32 : i32
    %47 = tpu.dynamic_rotate %43 by %c32_i32_21 dim 1 : vector<8x128xf32>, i32 -> vector<8x128xf32>
    %48 = arith.mulf %45, %32 : vector<8x128xf32>
    %49 = arith.mulf %43, %46 : vector<8x128xf32>
    %50 = arith.addf %48, %49 : vector<8x128xf32>
    %51 = math.tanh %50 : vector<8x128xf32>
    %52 = arith.mulf %47, %51 : vector<8x128xf32>
    %53 = arith.maximumf %35, %52 : vector<8x128xf32>
    %54 = vector.extract_strided_slice %13 {offsets = [16, 0], sizes = [8, 128], strides = [1, 1]} : vector<64x128xf32> to vector<8x128xf32>
    %cst_22 = arith.constant dense<0.000000e+00> : vector<8x128xf32>
    %55 = tpu.matmul %52, %14, %cst_22 {dimension_numbers = #tpu.dot_dimension_numbers<[1], [0], [0], [1], [0, 0, 1, 1], [], []>} : vector<8x128xf32>, vector<128x128xf32>, vector<8x128xf32> -> vector<8x128xf32>
    %56 = arith.addf %54, %55 : vector<8x128xf32>
    %57 = arith.negf %56 : vector<8x128xf32>
    %58 = math.exp %57 : vector<8x128xf32>
    %cst_23 = arith.constant 1.000000e+00 : f32
    %59 = vector.broadcast %cst_23 : f32 to vector<8x128xf32>
    %60 = arith.addf %59, %58 : vector<8x128xf32>
    %61 = arith.divf %59, %60 : vector<8x128xf32>
    %62 = math.tanh %56 : vector<8x128xf32>
    %c96_i32_24 = arith.constant 96 : i32
    %63 = tpu.dynamic_rotate %61 by %c96_i32_24 dim 1 : vector<8x128xf32>, i32 -> vector<8x128xf32>
    %c64_i32_25 = arith.constant 64 : i32
    %64 = tpu.dynamic_rotate %62 by %c64_i32_25 dim 1 : vector<8x128xf32>, i32 -> vector<8x128xf32>
    %c32_i32_26 = arith.constant 32 : i32
    %65 = tpu.dynamic_rotate %61 by %c32_i32_26 dim 1 : vector<8x128xf32>, i32 -> vector<8x128xf32>
    %66 = arith.mulf %63, %50 : vector<8x128xf32>
    %67 = arith.mulf %61, %64 : vector<8x128xf32>
    %68 = arith.addf %66, %67 : vector<8x128xf32>
    %69 = math.tanh %68 : vector<8x128xf32>
    %70 = arith.mulf %65, %69 : vector<8x128xf32>
    %71 = arith.maximumf %53, %70 : vector<8x128xf32>
    %72 = vector.extract_strided_slice %13 {offsets = [24, 0], sizes = [8, 128], strides = [1, 1]} : vector<64x128xf32> to vector<8x128xf32>
    %cst_27 = arith.constant dense<0.000000e+00> : vector<8x128xf32>
    %73 = tpu.matmul %70, %14, %cst_27 {dimension_numbers = #tpu.dot_dimension_numbers<[1], [0], [0], [1], [0, 0, 1, 1], [], []>} : vector<8x128xf32>, vector<128x128xf32>, vector<8x128xf32> -> vector<8x128xf32>
    %74 = arith.addf %72, %73 : vector<8x128xf32>
    %75 = arith.negf %74 : vector<8x128xf32>
    %76 = math.exp %75 : vector<8x128xf32>
    %cst_28 = arith.constant 1.000000e+00 : f32
    %77 = vector.broadcast %cst_28 : f32 to vector<8x128xf32>
    %78 = arith.addf %77, %76 : vector<8x128xf32>
    %79 = arith.divf %77, %78 : vector<8x128xf32>
    %80 = math.tanh %74 : vector<8x128xf32>
    %c96_i32_29 = arith.constant 96 : i32
    %81 = tpu.dynamic_rotate %79 by %c96_i32_29 dim 1 : vector<8x128xf32>, i32 -> vector<8x128xf32>
    %c64_i32_30 = arith.constant 64 : i32
    %82 = tpu.dynamic_rotate %80 by %c64_i32_30 dim 1 : vector<8x128xf32>, i32 -> vector<8x128xf32>
    %c32_i32_31 = arith.constant 32 : i32
    %83 = tpu.dynamic_rotate %79 by %c32_i32_31 dim 1 : vector<8x128xf32>, i32 -> vector<8x128xf32>
    %84 = arith.mulf %81, %68 : vector<8x128xf32>
    %85 = arith.mulf %79, %82 : vector<8x128xf32>
    %86 = arith.addf %84, %85 : vector<8x128xf32>
    %87 = math.tanh %86 : vector<8x128xf32>
    %88 = arith.mulf %83, %87 : vector<8x128xf32>
    %89 = arith.maximumf %71, %88 : vector<8x128xf32>
    %90 = vector.extract_strided_slice %13 {offsets = [32, 0], sizes = [8, 128], strides = [1, 1]} : vector<64x128xf32> to vector<8x128xf32>
    %cst_32 = arith.constant dense<0.000000e+00> : vector<8x128xf32>
    %91 = tpu.matmul %88, %14, %cst_32 {dimension_numbers = #tpu.dot_dimension_numbers<[1], [0], [0], [1], [0, 0, 1, 1], [], []>} : vector<8x128xf32>, vector<128x128xf32>, vector<8x128xf32> -> vector<8x128xf32>
    %92 = arith.addf %90, %91 : vector<8x128xf32>
    %93 = arith.negf %92 : vector<8x128xf32>
    %94 = math.exp %93 : vector<8x128xf32>
    %cst_33 = arith.constant 1.000000e+00 : f32
    %95 = vector.broadcast %cst_33 : f32 to vector<8x128xf32>
    %96 = arith.addf %95, %94 : vector<8x128xf32>
    %97 = arith.divf %95, %96 : vector<8x128xf32>
    %98 = math.tanh %92 : vector<8x128xf32>
    %c96_i32_34 = arith.constant 96 : i32
    %99 = tpu.dynamic_rotate %97 by %c96_i32_34 dim 1 : vector<8x128xf32>, i32 -> vector<8x128xf32>
    %c64_i32_35 = arith.constant 64 : i32
    %100 = tpu.dynamic_rotate %98 by %c64_i32_35 dim 1 : vector<8x128xf32>, i32 -> vector<8x128xf32>
    %c32_i32_36 = arith.constant 32 : i32
    %101 = tpu.dynamic_rotate %97 by %c32_i32_36 dim 1 : vector<8x128xf32>, i32 -> vector<8x128xf32>
    %102 = arith.mulf %99, %86 : vector<8x128xf32>
    %103 = arith.mulf %97, %100 : vector<8x128xf32>
    %104 = arith.addf %102, %103 : vector<8x128xf32>
    %105 = math.tanh %104 : vector<8x128xf32>
    %106 = arith.mulf %101, %105 : vector<8x128xf32>
    %107 = arith.maximumf %89, %106 : vector<8x128xf32>
    %108 = vector.extract_strided_slice %13 {offsets = [40, 0], sizes = [8, 128], strides = [1, 1]} : vector<64x128xf32> to vector<8x128xf32>
    %cst_37 = arith.constant dense<0.000000e+00> : vector<8x128xf32>
    %109 = tpu.matmul %106, %14, %cst_37 {dimension_numbers = #tpu.dot_dimension_numbers<[1], [0], [0], [1], [0, 0, 1, 1], [], []>} : vector<8x128xf32>, vector<128x128xf32>, vector<8x128xf32> -> vector<8x128xf32>
    %110 = arith.addf %108, %109 : vector<8x128xf32>
    %111 = arith.negf %110 : vector<8x128xf32>
    %112 = math.exp %111 : vector<8x128xf32>
    %cst_38 = arith.constant 1.000000e+00 : f32
    %113 = vector.broadcast %cst_38 : f32 to vector<8x128xf32>
    %114 = arith.addf %113, %112 : vector<8x128xf32>
    %115 = arith.divf %113, %114 : vector<8x128xf32>
    %116 = math.tanh %110 : vector<8x128xf32>
    %c96_i32_39 = arith.constant 96 : i32
    %117 = tpu.dynamic_rotate %115 by %c96_i32_39 dim 1 : vector<8x128xf32>, i32 -> vector<8x128xf32>
    %c64_i32_40 = arith.constant 64 : i32
    %118 = tpu.dynamic_rotate %116 by %c64_i32_40 dim 1 : vector<8x128xf32>, i32 -> vector<8x128xf32>
    %c32_i32_41 = arith.constant 32 : i32
    %119 = tpu.dynamic_rotate %115 by %c32_i32_41 dim 1 : vector<8x128xf32>, i32 -> vector<8x128xf32>
    %120 = arith.mulf %117, %104 : vector<8x128xf32>
    %121 = arith.mulf %115, %118 : vector<8x128xf32>
    %122 = arith.addf %120, %121 : vector<8x128xf32>
    %123 = math.tanh %122 : vector<8x128xf32>
    %124 = arith.mulf %119, %123 : vector<8x128xf32>
    %125 = arith.maximumf %107, %124 : vector<8x128xf32>
    %126 = vector.extract_strided_slice %13 {offsets = [48, 0], sizes = [8, 128], strides = [1, 1]} : vector<64x128xf32> to vector<8x128xf32>
    %cst_42 = arith.constant dense<0.000000e+00> : vector<8x128xf32>
    %127 = tpu.matmul %124, %14, %cst_42 {dimension_numbers = #tpu.dot_dimension_numbers<[1], [0], [0], [1], [0, 0, 1, 1], [], []>} : vector<8x128xf32>, vector<128x128xf32>, vector<8x128xf32> -> vector<8x128xf32>
    %128 = arith.addf %126, %127 : vector<8x128xf32>
    %129 = arith.negf %128 : vector<8x128xf32>
    %130 = math.exp %129 : vector<8x128xf32>
    %cst_43 = arith.constant 1.000000e+00 : f32
    %131 = vector.broadcast %cst_43 : f32 to vector<8x128xf32>
    %132 = arith.addf %131, %130 : vector<8x128xf32>
    %133 = arith.divf %131, %132 : vector<8x128xf32>
    %134 = math.tanh %128 : vector<8x128xf32>
    %c96_i32_44 = arith.constant 96 : i32
    %135 = tpu.dynamic_rotate %133 by %c96_i32_44 dim 1 : vector<8x128xf32>, i32 -> vector<8x128xf32>
    %c64_i32_45 = arith.constant 64 : i32
    %136 = tpu.dynamic_rotate %134 by %c64_i32_45 dim 1 : vector<8x128xf32>, i32 -> vector<8x128xf32>
    %c32_i32_46 = arith.constant 32 : i32
    %137 = tpu.dynamic_rotate %133 by %c32_i32_46 dim 1 : vector<8x128xf32>, i32 -> vector<8x128xf32>
    %138 = arith.mulf %135, %122 : vector<8x128xf32>
    %139 = arith.mulf %133, %136 : vector<8x128xf32>
    %140 = arith.addf %138, %139 : vector<8x128xf32>
    %141 = math.tanh %140 : vector<8x128xf32>
    %142 = arith.mulf %137, %141 : vector<8x128xf32>
    %143 = arith.maximumf %125, %142 : vector<8x128xf32>
    %144 = vector.extract_strided_slice %13 {offsets = [56, 0], sizes = [8, 128], strides = [1, 1]} : vector<64x128xf32> to vector<8x128xf32>
    %cst_47 = arith.constant dense<0.000000e+00> : vector<8x128xf32>
    %145 = tpu.matmul %142, %14, %cst_47 {dimension_numbers = #tpu.dot_dimension_numbers<[1], [0], [0], [1], [0, 0, 1, 1], [], []>} : vector<8x128xf32>, vector<128x128xf32>, vector<8x128xf32> -> vector<8x128xf32>
    %146 = arith.addf %144, %145 : vector<8x128xf32>
    %147 = arith.negf %146 : vector<8x128xf32>
    %148 = math.exp %147 : vector<8x128xf32>
    %cst_48 = arith.constant 1.000000e+00 : f32
    %149 = vector.broadcast %cst_48 : f32 to vector<8x128xf32>
    %150 = arith.addf %149, %148 : vector<8x128xf32>
    %151 = arith.divf %149, %150 : vector<8x128xf32>
    %152 = math.tanh %146 : vector<8x128xf32>
    %c96_i32_49 = arith.constant 96 : i32
    %153 = tpu.dynamic_rotate %151 by %c96_i32_49 dim 1 : vector<8x128xf32>, i32 -> vector<8x128xf32>
    %c64_i32_50 = arith.constant 64 : i32
    %154 = tpu.dynamic_rotate %152 by %c64_i32_50 dim 1 : vector<8x128xf32>, i32 -> vector<8x128xf32>
    %c32_i32_51 = arith.constant 32 : i32
    %155 = tpu.dynamic_rotate %151 by %c32_i32_51 dim 1 : vector<8x128xf32>, i32 -> vector<8x128xf32>
    %156 = arith.mulf %153, %140 : vector<8x128xf32>
    %157 = arith.mulf %151, %154 : vector<8x128xf32>
    %158 = arith.addf %156, %157 : vector<8x128xf32>
    %159 = math.tanh %158 : vector<8x128xf32>
    %160 = arith.mulf %155, %159 : vector<8x128xf32>
    %161 = arith.maximumf %143, %160 : vector<8x128xf32>
    %c0_52 = arith.constant 0 : index
    %c0_53 = arith.constant 0 : index
    %162 = vector.load %arg5[%c0_52, %c0_53] : memref<128x1xf32, #tpu.memory_space<vmem>>, vector<128x1xf32>
    %cst_54 = arith.constant dense<0.000000e+00> : vector<8x1xf32>
    %163 = tpu.matmul %161, %162, %cst_54 {dimension_numbers = #tpu.dot_dimension_numbers<[1], [0], [0], [1], [0, 0, 1, 1], [], []>} : vector<8x128xf32>, vector<128x1xf32>, vector<8x1xf32> -> vector<8x1xf32>
    %c0_55 = arith.constant 0 : index
    %c0_56 = arith.constant 0 : index
    %164 = vector.load %arg6[%c0_55, %c0_56] : memref<1x1xf32, #tpu.memory_space<vmem>>, vector<1x1xf32>
    %165 = vector.broadcast %164 : vector<1x1xf32> to vector<8x1xf32>
    %166 = arith.addf %163, %165 : vector<8x1xf32>
    %167 = arith.negf %166 : vector<8x1xf32>
    %168 = math.exp %167 : vector<8x1xf32>
    %cst_57 = arith.constant 1.000000e+00 : f32
    %169 = vector.broadcast %cst_57 : f32 to vector<8x1xf32>
    %170 = arith.addf %169, %168 : vector<8x1xf32>
    %171 = arith.divf %169, %170 : vector<8x1xf32>
    %c0_58 = arith.constant 0 : index
    %c0_59 = arith.constant 0 : index
    %172 = vector.load %arg7[%c0_58, %c0_59] : memref<8x1xf32, #tpu.memory_space<vmem>>, vector<8x1xf32>
    tpu.vector_store %arg7[%c0_58, %c0_59], %171 {strides = array<i32>} : memref<8x1xf32, #tpu.memory_space<vmem>>, vector<8x1xf32>,
    return
  }
}

</mosaic_0001>

<llo_original>
// kernel: lstm_forward.1
$region0: #{lstm_forward.1}
  #allocation0 [shape = 'u32[]', space=smem, size = 0x4, offset = 0x4, fixed_abs, tag = 'smem constant byte address 0x4 - core index']
  #allocation1 [shape = 'u32[144,128]{1,0:T(1,128)}', space=vmem, size = 0x12000, scoped, tag = 'internal scratch']
  #allocation2 [shape = 'f32[1,1]{1,0:T(1,128)S(1)}', space=vmem, size = 0x200, scoped, tag = 'scoped memory for lstm_forward.1']
  %s0 = inlined_call_operand.vmem [shape: s32[64,1], index: 0, kind: input, shape index: {}]
  %s1 = inlined_call_operand.vmem [shape: f32[128,128], index: 1, kind: input, shape index: {}]
  %s2 = inlined_call_operand.vmem [shape: f32[128,128], index: 2, kind: input, shape index: {}]
  %s3 = inlined_call_operand.vmem [shape: f32[128,128], index: 3, kind: input, shape index: {}]
  %s4 = inlined_call_operand.vmem [shape: f32[1,128], index: 4, kind: input, shape index: {}]
  %s5 = inlined_call_operand.vmem [shape: f32[128,1], index: 5, kind: input, shape index: {}]
  %s6 = inlined_call_operand.<no memory space> [shape: f32[1,1], index: 6, kind: input, shape index: {}]
  %s7 = inlined_call_operand.vmem [shape: f32[8,1], index: 7, kind: output, shape index: {}]
  %s8 = sld [smem:[#allocation0]]
  $region38: #{lstm_forward.1} parent=0
    _
  %s10 = ssub.s32 1, %s8
  %s11 = scalar_select 0, %s10, %s8
  %v12 = vstv %s6
  %13 = vst [vmem:[#allocation2] sm:$0x1] %v12
  // Predicated region
  $region2: #{lstm_forward.1} parent=0 // pred_check
    _
  $region3: #{lstm_forward.1} parent=0 // pred_check_branch
    %15 = sbr.rel (0) target = $region5
  $region4: #{lstm_forward.1} parent=0 // pred_region
    _
  $region5: #{lstm_forward.1} parent=0 // pred_fallthru
    _
  // Predicated region
  $region6: #{lstm_forward.1} parent=0 // pred_check
    _
  $region7: #{lstm_forward.1} parent=0 // pred_check_branch
    %17 = sbr.rel (0) target = $region9
  $region8: #{lstm_forward.1} parent=0 // pred_region
    _
  $region9: #{lstm_forward.1} parent=0 // pred_fallthru
    _
  // Predicated region
  $region10: #{lstm_forward.1} parent=0 // pred_check
    _
  $region11: #{lstm_forward.1} parent=0 // pred_check_branch
    %19 = sbr.rel (0) target = $region13
  $region12: #{lstm_forward.1} parent=0 // pred_region
    _
  $region13: #{lstm_forward.1} parent=0 // pred_fallthru
    _
  // Predicated region
  $region14: #{lstm_forward.1} parent=0 // pred_check
    _
  $region15: #{lstm_forward.1} parent=0 // pred_check_branch
    %21 = sbr.rel (0) target = $region17
  $region16: #{lstm_forward.1} parent=0 // pred_region
    _
  $region17: #{lstm_forward.1} parent=0 // pred_fallthru
    _
  // Predicated region
  $region18: #{lstm_forward.1} parent=0 // pred_check
    _
  $region19: #{lstm_forward.1} parent=0 // pred_check_branch
    %23 = sbr.rel (0) target = $region21
  $region20: #{lstm_forward.1} parent=0 // pred_region
    _
  $region21: #{lstm_forward.1} parent=0 // pred_fallthru
    _
  // Predicated region
  $region22: #{lstm_forward.1} parent=0 // pred_check
    _
  $region23: #{lstm_forward.1} parent=0 // pred_check_branch
    %25 = sbr.rel (0) target = $region25
  $region24: #{lstm_forward.1} parent=0 // pred_region
    _
  $region25: #{lstm_forward.1} parent=0 // pred_fallthru
    _
  // Predicated region
  $region26: #{lstm_forward.1} parent=0 // pred_check
    _
  $region27: #{lstm_forward.1} parent=0 // pred_check_branch
    %27 = sbr.rel (0) target = $region29
  $region28: #{lstm_forward.1} parent=0 // pred_region
    _
  $region29: #{lstm_forward.1} parent=0 // pred_fallthru
    _
  %v28 = vld [vmem:[%s0] sm:$0xff]
  %v29 = vld [vmem:[%s0 + $0x8] sm:$0xff]
  %v30 = vld [vmem:[%s0 + $0x10] sm:$0xff]
  %v31 = vld [vmem:[%s0 + $0x18] sm:$0xff]
  %v32 = vld [vmem:[%s0 + $0x20] sm:$0xff]
  %v33 = vld [vmem:[%s0 + $0x28] sm:$0xff]
  %v34 = vld [vmem:[%s0 + $0x30] sm:$0xff]
  %v35 = vld [vmem:[%s0 + $0x38] sm:$0xff]
  %v36 = vlaneseq
  %v37 = vand.u32 %v36, 127
  %38 = vset.pattern.permute.xlu0 0
  %39 = vperm.xlu0 %38, %v28
  %v40 = vpop.permute.xlu0 %39
  %41 = vset.pattern.permute.xlu0 0
  %42 = vperm.xlu0 %41, %v29
  %v43 = vpop.permute.xlu0 %42
  %44 = vset.pattern.permute.xlu0 0
  %45 = vperm.xlu0 %44, %v30
  %v46 = vpop.permute.xlu0 %45
  %47 = vset.pattern.permute.xlu0 0
  %48 = vperm.xlu0 %47, %v31
  %v49 = vpop.permute.xlu0 %48
  %50 = vset.pattern.permute.xlu0 0
  %51 = vperm.xlu0 %50, %v32
  %v52 = vpop.permute.xlu0 %51
  %53 = vset.pattern.permute.xlu0 0
  %54 = vperm.xlu0 %53, %v33
  %v55 = vpop.permute.xlu0 %54
  %56 = vset.pattern.permute.xlu0 0
  %57 = vperm.xlu0 %56, %v34
  %v58 = vpop.permute.xlu0 %57
  %59 = vset.pattern.permute.xlu0 0
  %60 = vperm.xlu0 %59, %v35
  %v61 = vpop.permute.xlu0 %60
  %vm62 = vcmp.eq.s32.totalorder %v37, %v40
  %vm63 = vcmp.eq.s32.totalorder %v37, %v43
  %vm64 = vcmp.eq.s32.totalorder %v37, %v46
  %vm65 = vcmp.eq.s32.totalorder %v37, %v49
  %vm66 = vcmp.eq.s32.totalorder %v37, %v52
  %vm67 = vcmp.eq.s32.totalorder %v37, %v55
  %vm68 = vcmp.eq.s32.totalorder %v37, %v58
  %vm69 = vcmp.eq.s32.totalorder %v37, %v61
  %v70 = vsel %vm62, 1.0, 0.0
  %v71 = vsel %vm63, 1.0, 0.0
  %v72 = vsel %vm64, 1.0, 0.0
  %v73 = vsel %vm65, 1.0, 0.0
  %v74 = vsel %vm66, 1.0, 0.0
  %v75 = vsel %vm67, 1.0, 0.0
  %v76 = vsel %vm68, 1.0, 0.0
  %v77 = vsel %vm69, 1.0, 0.0
  %v78 = vld [vmem:[%s1] sm:$0xff]
  %v79 = vld [vmem:[%s1 + $0x8] sm:$0xff]
  %v80 = vld [vmem:[%s1 + $0x10] sm:$0xff]
  %v81 = vld [vmem:[%s1 + $0x18] sm:$0xff]
  %v82 = vld [vmem:[%s1 + $0x20] sm:$0xff]
  %v83 = vld [vmem:[%s1 + $0x28] sm:$0xff]
  %v84 = vld [vmem:[%s1 + $0x30] sm:$0xff]
  %v85 = vld [vmem:[%s1 + $0x38] sm:$0xff]
  %v86 = vld [vmem:[%s1 + $0x40] sm:$0xff]
  %v87 = vld [vmem:[%s1 + $0x48] sm:$0xff]
  %v88 = vld [vmem:[%s1 + $0x50] sm:$0xff]
  %v89 = vld [vmem:[%s1 + $0x58] sm:$0xff]
  %v90 = vld [vmem:[%s1 + $0x60] sm:$0xff]
  %v91 = vld [vmem:[%s1 + $0x68] sm:$0xff]
  %v92 = vld [vmem:[%s1 + $0x70] sm:$0xff]
  %v93 = vld [vmem:[%s1 + $0x78] sm:$0xff]
  %94 = vmatprep.subr.mxu0 0.0
  %95 = vmatpush1.msra.mxu0 %v78
  %96 = vmatprep.subr.mxu0 0.0
  %97 = vmatpush1.msra.mxu0 %v79
  %98 = vmatprep.subr.mxu0 0.0
  %99 = vmatpush1.msra.mxu0 %v80
  %100 = vmatprep.subr.mxu0 0.0
  %101 = vmatpush1.msra.mxu0 %v81
  %102 = vmatprep.subr.mxu0 0.0
  %103 = vmatpush1.msra.mxu0 %v82
  %104 = vmatprep.subr.mxu0 0.0
  %105 = vmatpush1.msra.mxu0 %v83
  %106 = vmatprep.subr.mxu0 0.0
  %107 = vmatpush1.msra.mxu0 %v84
  %108 = vmatprep.subr.mxu0 0.0
  %109 = vmatpush1.msra.mxu0 %v85
  %110 = vmatprep.subr.mxu0 0.0
  %111 = vmatpush1.msra.mxu0 %v86
  %112 = vmatprep.subr.mxu0 0.0
  %113 = vmatpush1.msra.mxu0 %v87
  %114 = vmatprep.subr.mxu0 0.0
  %115 = vmatpush1.msra.mxu0 %v88
  %116 = vmatprep.subr.mxu0 0.0
  %117 = vmatpush1.msra.mxu0 %v89
  %118 = vmatprep.subr.mxu0 0.0
  %119 = vmatpush1.msra.mxu0 %v90
  %120 = vmatprep.subr.mxu0 0.0
  %121 = vmatpush1.msra.mxu0 %v91
  %122 = vmatprep.subr.mxu0 0.0
  %123 = vmatpush1.msra.mxu0 %v92
  %124 = vmatprep.subr.mxu0 0.0
  %125 = vmatpush1.msra.mxu0 %v93
  %126 = vmatprep.subr.mxu0 0.0
  %127 = vmatpush1.msra.mxu0 0.0
  %128 = vmatprep.subr.mxu0 0.0
  %129 = vmatpush1.msra.mxu0 0.0
  %130 = vmatprep.subr.mxu0 0.0
  %131 = vmatpush1.msra.mxu0 0.0
  %132 = vmatprep.subr.mxu0 0.0
  %133 = vmatpush1.msra.mxu0 0.0
  %134 = vmatprep.subr.mxu0 0.0
  %135 = vmatpush1.msra.mxu0 0.0
  %136 = vmatprep.subr.mxu0 0.0
  %137 = vmatpush1.msra.mxu0 0.0
  %138 = vmatprep.subr.mxu0 0.0
  %139 = vmatpush1.msra.mxu0 0.0
  %140 = vmatprep.subr.mxu0 0.0
  %141 = vmatpush1.msra.mxu0 0.0
  %142 = vmatprep.subr.mxu0 0.0
  %143 = vmatpush1.msra.mxu0 0.0
  %144 = vmatprep.subr.mxu0 0.0
  %145 = vmatpush1.msra.mxu0 0.0
  %146 = vmatprep.subr.mxu0 0.0
  %147 = vmatpush1.msra.mxu0 0.0
  %148 = vmatprep.subr.mxu0 0.0
  %149 = vmatpush1.msra.mxu0 0.0
  %150 = vmatprep.subr.mxu0 0.0
  %151 = vmatpush1.msra.mxu0 0.0
  %152 = vmatprep.subr.mxu0 0.0
  %153 = vmatpush1.msra.mxu0 0.0
  %154 = vmatprep.subr.mxu0 0.0
  %155 = vmatpush1.msra.mxu0 0.0
  %156 = vmatprep.subr.mxu0 0.0
  %157 = vmatpush1.msra.mxu0 0.0
  %158 = vmatprep.mubr.f32.mxu0 0.0
  %159 = vmatmul.mubr.f32.gmra.mrb[0].mxu0 %v70
  %v160 = vpop.f32.mrb[0].mxu0
  %v161 = vadd.f32 0.0, %v160
  %v162 = vpop.f32.mrb[0].mxu0
  %163 = vmatprep.mubr.f32.mxu0 0.0
  %164 = vmatmul.mubr.f32.gmra.mrb[0].mxu0 %v71
  %v165 = vpop.f32.mrb[0].mxu0
  %v166 = vadd.f32 0.0, %v165
  %v167 = vpop.f32.mrb[0].mxu0
  %168 = vmatprep.mubr.f32.mxu0 0.0
  %169 = vmatmul.mubr.f32.gmra.mrb[0].mxu0 %v72
  %v170 = vpop.f32.mrb[0].mxu0
  %v171 = vadd.f32 0.0, %v170
  %v172 = vpop.f32.mrb[0].mxu0
  %173 = vmatprep.mubr.f32.mxu0 0.0
  %174 = vmatmul.mubr.f32.gmra.mrb[0].mxu0 %v73
  %v175 = vpop.f32.mrb[0].mxu0
  %v176 = vadd.f32 0.0, %v175
  %v177 = vpop.f32.mrb[0].mxu0
  %178 = vmatprep.mubr.f32.mxu0 0.0
  %179 = vmatmul.mubr.f32.gmra.mrb[0].mxu0 %v74
  %v180 = vpop.f32.mrb[0].mxu0
  %v181 = vadd.f32 0.0, %v180
  %v182 = vpop.f32.mrb[0].mxu0
  %183 = vmatprep.mubr.f32.mxu0 0.0
  %184 = vmatmul.mubr.f32.gmra.mrb[0].mxu0 %v75
  %v185 = vpop.f32.mrb[0].mxu0
  %v186 = vadd.f32 0.0, %v185
  %v187 = vpop.f32.mrb[0].mxu0
  %188 = vmatprep.mubr.f32.mxu0 0.0
  %189 = vmatmul.mubr.f32.gmra.mrb[0].mxu0 %v76
  %v190 = vpop.f32.mrb[0].mxu0
  %v191 = vadd.f32 0.0, %v190
  %v192 = vpop.f32.mrb[0].mxu0
  %193 = vmatprep.mubr.f32.mxu0 0.0
  %194 = vmatmul.mubr.f32.gmra.mrb[0].mxu0 %v77
  %v195 = vpop.f32.mrb[0].mxu0
  %v196 = vadd.f32 0.0, %v195
  %v197 = vpop.f32.mrb[0].mxu0
  %198 = vdwg.mxu0
  %v199 = vld [vmem:[%s2] sm:$0xff]
  %v200 = vld [vmem:[%s2 + $0x8] sm:$0xff]
  %v201 = vld [vmem:[%s2 + $0x10] sm:$0xff]
  %v202 = vld [vmem:[%s2 + $0x18] sm:$0xff]
  %v203 = vld [vmem:[%s2 + $0x20] sm:$0xff]
  %v204 = vld [vmem:[%s2 + $0x28] sm:$0xff]
  %v205 = vld [vmem:[%s2 + $0x30] sm:$0xff]
  %v206 = vld [vmem:[%s2 + $0x38] sm:$0xff]
  %v207 = vld [vmem:[%s2 + $0x40] sm:$0xff]
  %v208 = vld [vmem:[%s2 + $0x48] sm:$0xff]
  %v209 = vld [vmem:[%s2 + $0x50] sm:$0xff]
  %v210 = vld [vmem:[%s2 + $0x58] sm:$0xff]
  %v211 = vld [vmem:[%s2 + $0x60] sm:$0xff]
  %v212 = vld [vmem:[%s2 + $0x68] sm:$0xff]
  %v213 = vld [vmem:[%s2 + $0x70] sm:$0xff]
  %v214 = vld [vmem:[%s2 + $0x78] sm:$0xff]
  %v215 = vld [vmem:[%s4] sm:$0x1]
  %v217 = vlaneseq
  %v218 = vshrl.u32 %v217, 7
  %v219 = vsub.s32 0, %v218
  %v220 = vrot.slane %v215, %v219
  %222 = vmatprep.subr.mxu0 0.0
  %223 = vmatpush1.msra.mxu0 %v199
  %224 = vmatprep.subr.mxu0 0.0
  %225 = vmatpush1.msra.mxu0 %v200
  %226 = vmatprep.subr.mxu0 0.0
  %227 = vmatpush1.msra.mxu0 %v201
  %228 = vmatprep.subr.mxu0 0.0
  %229 = vmatpush1.msra.mxu0 %v202
  %230 = vmatprep.subr.mxu0 0.0
  %231 = vmatpush1.msra.mxu0 %v203
  %232 = vmatprep.subr.mxu0 0.0
  %233 = vmatpush1.msra.mxu0 %v204
  %234 = vmatprep.subr.mxu0 0.0
  %235 = vmatpush1.msra.mxu0 %v205
  %236 = vmatprep.subr.mxu0 0.0
  %237 = vmatpush1.msra.mxu0 %v206
  %238 = vmatprep.subr.mxu0 0.0
  %239 = vmatpush1.msra.mxu0 %v207
  %240 = vmatprep.subr.mxu0 0.0
  %241 = vmatpush1.msra.mxu0 %v208
  %242 = vmatprep.subr.mxu0 0.0
  %243 = vmatpush1.msra.mxu0 %v209
  %244 = vmatprep.subr.mxu0 0.0
  %245 = vmatpush1.msra.mxu0 %v210
  %246 = vmatprep.subr.mxu0 0.0
  %247 = vmatpush1.msra.mxu0 %v211
  %248 = vmatprep.subr.mxu0 0.0
  %249 = vmatpush1.msra.mxu0 %v212
  %250 = vmatprep.subr.mxu0 0.0
  %251 = vmatpush1.msra.mxu0 %v213
  %252 = vmatprep.subr.mxu0 0.0
  %253 = vmatpush1.msra.mxu0 %v214
  %254 = vmatprep.subr.mxu0 0.0
  %255 = vmatpush1.msra.mxu0 0.0
  %256 = vmatprep.subr.mxu0 0.0
  %257 = vmatpush1.msra.mxu0 0.0
  %258 = vmatprep.subr.mxu0 0.0
  %259 = vmatpush1.msra.mxu0 0.0
  %260 = vmatprep.subr.mxu0 0.0
  %261 = vmatpush1.msra.mxu0 0.0
  %262 = vmatprep.subr.mxu0 0.0
  %263 = vmatpush1.msra.mxu0 0.0
  %264 = vmatprep.subr.mxu0 0.0
  %265 = vmatpush1.msra.mxu0 0.0
  %266 = vmatprep.subr.mxu0 0.0
  %267 = vmatpush1.msra.mxu0 0.0
  %268 = vmatprep.subr.mxu0 0.0
  %269 = vmatpush1.msra.mxu0 0.0
  %270 = vmatprep.subr.mxu0 0.0
  %271 = vmatpush1.msra.mxu0 0.0
  %272 = vmatprep.subr.mxu0 0.0
  %273 = vmatpush1.msra.mxu0 0.0
  %274 = vmatprep.subr.mxu0 0.0
  %275 = vmatpush1.msra.mxu0 0.0
  %276 = vmatprep.subr.mxu0 0.0
  %277 = vmatpush1.msra.mxu0 0.0
  %278 = vmatprep.subr.mxu0 0.0
  %279 = vmatpush1.msra.mxu0 0.0
  %280 = vmatprep.subr.mxu0 0.0
  %281 = vmatpush1.msra.mxu0 0.0
  %282 = vmatprep.subr.mxu0 0.0
  %283 = vmatpush1.msra.mxu0 0.0
  %284 = vmatprep.subr.mxu0 0.0
  %285 = vmatpush1.msra.mxu0 0.0
  %286 = vmatprep.mubr.f32.mxu0 0.0
  %287 = vmatmul.mubr.f32.gmra.mrb[0].mxu0 %v161
  %v288 = vpop.f32.mrb[0].mxu0
  %v289 = vadd.f32 %v220, %v288
  %v290 = vpop.f32.mrb[0].mxu0
  %291 = vmatprep.mubr.f32.mxu0 0.0
  %292 = vmatmul.mubr.f32.gmra.mrb[0].mxu0 %v166
  %v293 = vpop.f32.mrb[0].mxu0
  %v294 = vadd.f32 %v220, %v293
  %v295 = vpop.f32.mrb[0].mxu0
  %296 = vmatprep.mubr.f32.mxu0 0.0
  %297 = vmatmul.mubr.f32.gmra.mrb[0].mxu0 %v171
  %v298 = vpop.f32.mrb[0].mxu0
  %v299 = vadd.f32 %v220, %v298
  %v300 = vpop.f32.mrb[0].mxu0
  %301 = vmatprep.mubr.f32.mxu0 0.0
  %302 = vmatmul.mubr.f32.gmra.mrb[0].mxu0 %v176
  %v303 = vpop.f32.mrb[0].mxu0
  %v304 = vadd.f32 %v220, %v303
  %v305 = vpop.f32.mrb[0].mxu0
  %306 = vmatprep.mubr.f32.mxu0 0.0
  %307 = vmatmul.mubr.f32.gmra.mrb[0].mxu0 %v181
  %v308 = vpop.f32.mrb[0].mxu0
  %v309 = vadd.f32 %v220, %v308
  %v310 = vpop.f32.mrb[0].mxu0
  %311 = vmatprep.mubr.f32.mxu0 0.0
  %312 = vmatmul.mubr.f32.gmra.mrb[0].mxu0 %v186
  %v313 = vpop.f32.mrb[0].mxu0
  %v314 = vadd.f32 %v220, %v313
  %v315 = vpop.f32.mrb[0].mxu0
  %316 = vmatprep.mubr.f32.mxu0 0.0
  %317 = vmatmul.mubr.f32.gmra.mrb[0].mxu0 %v191
  %v318 = vpop.f32.mrb[0].mxu0
  %v319 = vadd.f32 %v220, %v318
  %v320 = vpop.f32.mrb[0].mxu0
  %321 = vmatprep.mubr.f32.mxu0 0.0
  %322 = vmatmul.mubr.f32.gmra.mrb[0].mxu0 %v196
  %v323 = vpop.f32.mrb[0].mxu0
  %v324 = vadd.f32 %v220, %v323
  %v325 = vpop.f32.mrb[0].mxu0
  %326 = vdwg.mxu0
  %v327 = vld [vmem:[%s3] sm:$0xff]
  %v328 = vld [vmem:[%s3 + $0x8] sm:$0xff]
  %v329 = vld [vmem:[%s3 + $0x10] sm:$0xff]
  %v330 = vld [vmem:[%s3 + $0x18] sm:$0xff]
  %v331 = vld [vmem:[%s3 + $0x20] sm:$0xff]
  %v332 = vld [vmem:[%s3 + $0x28] sm:$0xff]
  %v333 = vld [vmem:[%s3 + $0x30] sm:$0xff]
  %v334 = vld [vmem:[%s3 + $0x38] sm:$0xff]
  %v335 = vld [vmem:[%s3 + $0x40] sm:$0xff]
  %v336 = vld [vmem:[%s3 + $0x48] sm:$0xff]
  %v337 = vld [vmem:[%s3 + $0x50] sm:$0xff]
  %v338 = vld [vmem:[%s3 + $0x58] sm:$0xff]
  %v339 = vld [vmem:[%s3 + $0x60] sm:$0xff]
  %v340 = vld [vmem:[%s3 + $0x68] sm:$0xff]
  %v341 = vld [vmem:[%s3 + $0x70] sm:$0xff]
  %v342 = vld [vmem:[%s3 + $0x78] sm:$0xff]
  %343 = vmatprep.subr.mxu0 0.0
  %344 = vmatpush1.msra.mxu0 %v327
  %345 = vmatprep.subr.mxu0 0.0
  %346 = vmatpush1.msra.mxu0 %v328
  %347 = vmatprep.subr.mxu0 0.0
  %348 = vmatpush1.msra.mxu0 %v329
  %349 = vmatprep.subr.mxu0 0.0
  %350 = vmatpush1.msra.mxu0 %v330
  %351 = vmatprep.subr.mxu0 0.0
  %352 = vmatpush1.msra.mxu0 %v331
  %353 = vmatprep.subr.mxu0 0.0
  %354 = vmatpush1.msra.mxu0 %v332
  %355 = vmatprep.subr.mxu0 0.0
  %356 = vmatpush1.msra.mxu0 %v333
  %357 = vmatprep.subr.mxu0 0.0
  %358 = vmatpush1.msra.mxu0 %v334
  %359 = vmatprep.subr.mxu0 0.0
  %360 = vmatpush1.msra.mxu0 %v335
  %361 = vmatprep.subr.mxu0 0.0
  %362 = vmatpush1.msra.mxu0 %v336
  %363 = vmatprep.subr.mxu0 0.0
  %364 = vmatpush1.msra.mxu0 %v337
  %365 = vmatprep.subr.mxu0 0.0
  %366 = vmatpush1.msra.mxu0 %v338
  %367 = vmatprep.subr.mxu0 0.0
  %368 = vmatpush1.msra.mxu0 %v339
  %369 = vmatprep.subr.mxu0 0.0
  %370 = vmatpush1.msra.mxu0 %v340
  %371 = vmatprep.subr.mxu0 0.0
  %372 = vmatpush1.msra.mxu0 %v341
  %373 = vmatprep.subr.mxu0 0.0
  %374 = vmatpush1.msra.mxu0 %v342
  %375 = vmatprep.subr.mxu0 0.0
  %376 = vmatpush1.msra.mxu0 0.0
  %377 = vmatprep.subr.mxu0 0.0
  %378 = vmatpush1.msra.mxu0 0.0
  %379 = vmatprep.subr.mxu0 0.0
  %380 = vmatpush1.msra.mxu0 0.0
  %381 = vmatprep.subr.mxu0 0.0
  %382 = vmatpush1.msra.mxu0 0.0
  %383 = vmatprep.subr.mxu0 0.0
  %384 = vmatpush1.msra.mxu0 0.0
  %385 = vmatprep.subr.mxu0 0.0
  %386 = vmatpush1.msra.mxu0 0.0
  %387 = vmatprep.subr.mxu0 0.0
  %388 = vmatpush1.msra.mxu0 0.0
  %389 = vmatprep.subr.mxu0 0.0
  %390 = vmatpush1.msra.mxu0 0.0
  %391 = vmatprep.subr.mxu0 0.0
  %392 = vmatpush1.msra.mxu0 0.0
  %393 = vmatprep.subr.mxu0 0.0
  %394 = vmatpush1.msra.mxu0 0.0
  %395 = vmatprep.subr.mxu0 0.0
  %396 = vmatpush1.msra.mxu0 0.0
  %397 = vmatprep.subr.mxu0 0.0
  %398 = vmatpush1.msra.mxu0 0.0
  %399 = vmatprep.subr.mxu0 0.0
  %400 = vmatpush1.msra.mxu0 0.0
  %401 = vmatprep.subr.mxu0 0.0
  %402 = vmatpush1.msra.mxu0 0.0
  %403 = vmatprep.subr.mxu0 0.0
  %404 = vmatpush1.msra.mxu0 0.0
  %405 = vmatprep.subr.mxu0 0.0
  %406 = vmatpush1.msra.mxu0 0.0
  %407 = vmatprep.mubr.f32.mxu0 0.0
  %408 = vmatmul.mubr.f32.gmra.mrb[0].mxu0 0.0
  %v409 = vpop.f32.mrb[0].mxu0
  %v410 = vadd.f32 0.0, %v409
  %v411 = vpop.f32.mrb[0].mxu0
  %412 = vdwg.mxu0
  %v413 = vadd.f32 %v289, %v410
  %v414 = vxor.u32 %v413, 2147483648
  %v415 = vmul.f32 %v414, 1.442695
  %v416 = vpow.pop %v415
  %v417 = vadd.f32 %v416, 1.0
  %v418 = vrcp.pop %v417
  %v419 = vmul.f32 1.0, %v418
  %v420 = vtanh.pop %v413
  %421 = vrot.lane.b32.xlu0 %v419, 96
  %v422 = vpop.permute.xlu0 %421
  %423 = vrot.lane.b32.xlu0 %v420, 64
  %v424 = vpop.permute.xlu0 %423
  %425 = vrot.lane.b32.xlu0 %v419, 32
  %v426 = vpop.permute.xlu0 %425
  %v427 = vmul.f32 %v422, 0.0
  %v428 = vmul.f32 %v419, %v424
  %v429 = vadd.f32 %v427, %v428
  %v430 = vtanh.pop %v429
  %v431 = vmul.f32 %v426, %v430
  %432 = vmatprep.subr.mxu0 0.0
  %433 = vmatpush1.msra.mxu0 %v327
  %434 = vmatprep.subr.mxu0 0.0
  %435 = vmatpush1.msra.mxu0 %v328
  %436 = vmatprep.subr.mxu0 0.0
  %437 = vmatpush1.msra.mxu0 %v329
  %438 = vmatprep.subr.mxu0 0.0
  %439 = vmatpush1.msra.mxu0 %v330
  %440 = vmatprep.subr.mxu0 0.0
  %441 = vmatpush1.msra.mxu0 %v331
  %442 = vmatprep.subr.mxu0 0.0
  %443 = vmatpush1.msra.mxu0 %v332
  %444 = vmatprep.subr.mxu0 0.0
  %445 = vmatpush1.msra.mxu0 %v333
  %446 = vmatprep.subr.mxu0 0.0
  %447 = vmatpush1.msra.mxu0 %v334
  %448 = vmatprep.subr.mxu0 0.0
  %449 = vmatpush1.msra.mxu0 %v335
  %450 = vmatprep.subr.mxu0 0.0
  %451 = vmatpush1.msra.mxu0 %v336
  %452 = vmatprep.subr.mxu0 0.0
  %453 = vmatpush1.msra.mxu0 %v337
  %454 = vmatprep.subr.mxu0 0.0
  %455 = vmatpush1.msra.mxu0 %v338
  %456 = vmatprep.subr.mxu0 0.0
  %457 = vmatpush1.msra.mxu0 %v339
  %458 = vmatprep.subr.mxu0 0.0
  %459 = vmatpush1.msra.mxu0 %v340
  %460 = vmatprep.subr.mxu0 0.0
  %461 = vmatpush1.msra.mxu0 %v341
  %462 = vmatprep.subr.mxu0 0.0
  %463 = vmatpush1.msra.mxu0 %v342
  %464 = vmatprep.subr.mxu0 0.0
  %465 = vmatpush1.msra.mxu0 0.0
  %466 = vmatprep.subr.mxu0 0.0
  %467 = vmatpush1.msra.mxu0 0.0
  %468 = vmatprep.subr.mxu0 0.0
  %469 = vmatpush1.msra.mxu0 0.0
  %470 = vmatprep.subr.mxu0 0.0
  %471 = vmatpush1.msra.mxu0 0.0
  %472 = vmatprep.subr.mxu0 0.0
  %473 = vmatpush1.msra.mxu0 0.0
  %474 = vmatprep.subr.mxu0 0.0
  %475 = vmatpush1.msra.mxu0 0.0
  %476 = vmatprep.subr.mxu0 0.0
  %477 = vmatpush1.msra.mxu0 0.0
  %478 = vmatprep.subr.mxu0 0.0
  %479 = vmatpush1.msra.mxu0 0.0
  %480 = vmatprep.subr.mxu0 0.0
  %481 = vmatpush1.msra.mxu0 0.0
  %482 = vmatprep.subr.mxu0 0.0
  %483 = vmatpush1.msra.mxu0 0.0
  %484 = vmatprep.subr.mxu0 0.0
  %485 = vmatpush1.msra.mxu0 0.0
  %486 = vmatprep.subr.mxu0 0.0
  %487 = vmatpush1.msra.mxu0 0.0
  %488 = vmatprep.subr.mxu0 0.0
  %489 = vmatpush1.msra.mxu0 0.0
  %490 = vmatprep.subr.mxu0 0.0
  %491 = vmatpush1.msra.mxu0 0.0
  %492 = vmatprep.subr.mxu0 0.0
  %493 = vmatpush1.msra.mxu0 0.0
  %494 = vmatprep.subr.mxu0 0.0
  %495 = vmatpush1.msra.mxu0 0.0
  %496 = vmatprep.mubr.f32.mxu0 0.0
  %497 = vmatmul.mubr.f32.gmra.mrb[0].mxu0 %v431
  %v498 = vpop.f32.mrb[0].mxu0
  %v499 = vadd.f32 0.0, %v498
  %v500 = vpop.f32.mrb[0].mxu0
  %501 = vdwg.mxu0
  %v502 = vadd.f32 %v294, %v499
  %v503 = vxor.u32 %v502, 2147483648
  %v504 = vmul.f32 %v503, 1.442695
  %v505 = vpow.pop %v504
  %v506 = vadd.f32 %v505, 1.0
  %v507 = vrcp.pop %v506
  %v508 = vmul.f32 1.0, %v507
  %v509 = vtanh.pop %v502
  %510 = vrot.lane.b32.xlu0 %v508, 96
  %v511 = vpop.permute.xlu0 %510
  %512 = vrot.lane.b32.xlu0 %v509, 64
  %v513 = vpop.permute.xlu0 %512
  %514 = vrot.lane.b32.xlu0 %v508, 32
  %v515 = vpop.permute.xlu0 %514
  %v516 = vmul.f32 %v511, %v429
  %v517 = vmul.f32 %v508, %v513
  %v518 = vadd.f32 %v516, %v517
  %v519 = vtanh.pop %v518
  %v520 = vmul.f32 %v515, %v519
  %v521 = vmax.f32 %v431, %v520
  %522 = vmatprep.subr.mxu0 0.0
  %523 = vmatpush1.msra.mxu0 %v327
  %524 = vmatprep.subr.mxu0 0.0
  %525 = vmatpush1.msra.mxu0 %v328
  %526 = vmatprep.subr.mxu0 0.0
  %527 = vmatpush1.msra.mxu0 %v329
  %528 = vmatprep.subr.mxu0 0.0
  %529 = vmatpush1.msra.mxu0 %v330
  %530 = vmatprep.subr.mxu0 0.0
  %531 = vmatpush1.msra.mxu0 %v331
  %532 = vmatprep.subr.mxu0 0.0
  %533 = vmatpush1.msra.mxu0 %v332
  %534 = vmatprep.subr.mxu0 0.0
  %535 = vmatpush1.msra.mxu0 %v333
  %536 = vmatprep.subr.mxu0 0.0
  %537 = vmatpush1.msra.mxu0 %v334
  %538 = vmatprep.subr.mxu0 0.0
  %539 = vmatpush1.msra.mxu0 %v335
  %540 = vmatprep.subr.mxu0 0.0
  %541 = vmatpush1.msra.mxu0 %v336
  %542 = vmatprep.subr.mxu0 0.0
  %543 = vmatpush1.msra.mxu0 %v337
  %544 = vmatprep.subr.mxu0 0.0
  %545 = vmatpush1.msra.mxu0 %v338
  %546 = vmatprep.subr.mxu0 0.0
  %547 = vmatpush1.msra.mxu0 %v339
  %548 = vmatprep.subr.mxu0 0.0
  %549 = vmatpush1.msra.mxu0 %v340
  %550 = vmatprep.subr.mxu0 0.0
  %551 = vmatpush1.msra.mxu0 %v341
  %552 = vmatprep.subr.mxu0 0.0
  %553 = vmatpush1.msra.mxu0 %v342
  %554 = vmatprep.subr.mxu0 0.0
  %555 = vmatpush1.msra.mxu0 0.0
  %556 = vmatprep.subr.mxu0 0.0
  %557 = vmatpush1.msra.mxu0 0.0
  %558 = vmatprep.subr.mxu0 0.0
  %559 = vmatpush1.msra.mxu0 0.0
  %560 = vmatprep.subr.mxu0 0.0
  %561 = vmatpush1.msra.mxu0 0.0
  %562 = vmatprep.subr.mxu0 0.0
  %563 = vmatpush1.msra.mxu0 0.0
  %564 = vmatprep.subr.mxu0 0.0
  %565 = vmatpush1.msra.mxu0 0.0
  %566 = vmatprep.subr.mxu0 0.0
  %567 = vmatpush1.msra.mxu0 0.0
  %568 = vmatprep.subr.mxu0 0.0
  %569 = vmatpush1.msra.mxu0 0.0
  %570 = vmatprep.subr.mxu0 0.0
  %571 = vmatpush1.msra.mxu0 0.0
  %572 = vmatprep.subr.mxu0 0.0
  %573 = vmatpush1.msra.mxu0 0.0
  %574 = vmatprep.subr.mxu0 0.0
  %575 = vmatpush1.msra.mxu0 0.0
  %576 = vmatprep.subr.mxu0 0.0
  %577 = vmatpush1.msra.mxu0 0.0
  %578 = vmatprep.subr.mxu0 0.0
  %579 = vmatpush1.msra.mxu0 0.0
  %580 = vmatprep.subr.mxu0 0.0
  %581 = vmatpush1.msra.mxu0 0.0
  %582 = vmatprep.subr.mxu0 0.0
  %583 = vmatpush1.msra.mxu0 0.0
  %584 = vmatprep.subr.mxu0 0.0
  %585 = vmatpush1.msra.mxu0 0.0
  %586 = vmatprep.mubr.f32.mxu0 0.0
  %587 = vmatmul.mubr.f32.gmra.mrb[0].mxu0 %v520
  %v588 = vpop.f32.mrb[0].mxu0
  %v589 = vadd.f32 0.0, %v588
  %v590 = vpop.f32.mrb[0].mxu0
  %591 = vdwg.mxu0
  %v592 = vadd.f32 %v299, %v589
  %v593 = vxor.u32 %v592, 2147483648
  %v594 = vmul.f32 %v593, 1.442695
  %v595 = vpow.pop %v594
  %v596 = vadd.f32 %v595, 1.0
  %v597 = vrcp.pop %v596
  %v598 = vmul.f32 1.0, %v597
  %v599 = vtanh.pop %v592
  %600 = vrot.lane.b32.xlu0 %v598, 96
  %v601 = vpop.permute.xlu0 %600
  %602 = vrot.lane.b32.xlu0 %v599, 64
  %v603 = vpop.permute.xlu0 %602
  %604 = vrot.lane.b32.xlu0 %v598, 32
  %v605 = vpop.permute.xlu0 %604
  %v606 = vmul.f32 %v601, %v518
  %v607 = vmul.f32 %v598, %v603
  %v608 = vadd.f32 %v606, %v607
  %v609 = vtanh.pop %v608
  %v610 = vmul.f32 %v605, %v609
  %v611 = vmax.f32 %v521, %v610
  %612 = vmatprep.subr.mxu0 0.0
  %613 = vmatpush1.msra.mxu0 %v327
  %614 = vmatprep.subr.mxu0 0.0
  %615 = vmatpush1.msra.mxu0 %v328
  %616 = vmatprep.subr.mxu0 0.0
  %617 = vmatpush1.msra.mxu0 %v329
  %618 = vmatprep.subr.mxu0 0.0
  %619 = vmatpush1.msra.mxu0 %v330
  %620 = vmatprep.subr.mxu0 0.0
  %621 = vmatpush1.msra.mxu0 %v331
  %622 = vmatprep.subr.mxu0 0.0
  %623 = vmatpush1.msra.mxu0 %v332
  %624 = vmatprep.subr.mxu0 0.0
  %625 = vmatpush1.msra.mxu0 %v333
  %626 = vmatprep.subr.mxu0 0.0
  %627 = vmatpush1.msra.mxu0 %v334
  %628 = vmatprep.subr.mxu0 0.0
  %629 = vmatpush1.msra.mxu0 %v335
  %630 = vmatprep.subr.mxu0 0.0
  %631 = vmatpush1.msra.mxu0 %v336
  %632 = vmatprep.subr.mxu0 0.0
  %633 = vmatpush1.msra.mxu0 %v337
  %634 = vmatprep.subr.mxu0 0.0
  %635 = vmatpush1.msra.mxu0 %v338
  %636 = vmatprep.subr.mxu0 0.0
  %637 = vmatpush1.msra.mxu0 %v339
  %638 = vmatprep.subr.mxu0 0.0
  %639 = vmatpush1.msra.mxu0 %v340
  %640 = vmatprep.subr.mxu0 0.0
  %641 = vmatpush1.msra.mxu0 %v341
  %642 = vmatprep.subr.mxu0 0.0
  %643 = vmatpush1.msra.mxu0 %v342
  %644 = vmatprep.subr.mxu0 0.0
  %645 = vmatpush1.msra.mxu0 0.0
  %646 = vmatprep.subr.mxu0 0.0
  %647 = vmatpush1.msra.mxu0 0.0
  %648 = vmatprep.subr.mxu0 0.0
  %649 = vmatpush1.msra.mxu0 0.0
  %650 = vmatprep.subr.mxu0 0.0
  %651 = vmatpush1.msra.mxu0 0.0
  %652 = vmatprep.subr.mxu0 0.0
  %653 = vmatpush1.msra.mxu0 0.0
  %654 = vmatprep.subr.mxu0 0.0
  %655 = vmatpush1.msra.mxu0 0.0
  %656 = vmatprep.subr.mxu0 0.0
  %657 = vmatpush1.msra.mxu0 0.0
  %658 = vmatprep.subr.mxu0 0.0
  %659 = vmatpush1.msra.mxu0 0.0
  %660 = vmatprep.subr.mxu0 0.0
  %661 = vmatpush1.msra.mxu0 0.0
  %662 = vmatprep.subr.mxu0 0.0
  %663 = vmatpush1.msra.mxu0 0.0
  %664 = vmatprep.subr.mxu0 0.0
  %665 = vmatpush1.msra.mxu0 0.0
  %666 = vmatprep.subr.mxu0 0.0
  %667 = vmatpush1.msra.mxu0 0.0
  %668 = vmatprep.subr.mxu0 0.0
  %669 = vmatpush1.msra.mxu0 0.0
  %670 = vmatprep.subr.mxu0 0.0
  %671 = vmatpush1.msra.mxu0 0.0
  %672 = vmatprep.subr.mxu0 0.0
  %673 = vmatpush1.msra.mxu0 0.0
  %674 = vmatprep.subr.mxu0 0.0
  %675 = vmatpush1.msra.mxu0 0.0
  %676 = vmatprep.mubr.f32.mxu0 0.0
  %677 = vmatmul.mubr.f32.gmra.mrb[0].mxu0 %v610
  %v678 = vpop.f32.mrb[0].mxu0
  %v679 = vadd.f32 0.0, %v678
  %v680 = vpop.f32.mrb[0].mxu0
  %681 = vdwg.mxu0
  %v682 = vadd.f32 %v304, %v679
  %v683 = vxor.u32 %v682, 2147483648
  %v684 = vmul.f32 %v683, 1.442695
  %v685 = vpow.pop %v684
  %v686 = vadd.f32 %v685, 1.0
  %v687 = vrcp.pop %v686
  %v688 = vmul.f32 1.0, %v687
  %v689 = vtanh.pop %v682
  %690 = vrot.lane.b32.xlu0 %v688, 96
  %v691 = vpop.permute.xlu0 %690
  %692 = vrot.lane.b32.xlu0 %v689, 64
  %v693 = vpop.permute.xlu0 %692
  %694 = vrot.lane.b32.xlu0 %v688, 32
  %v695 = vpop.permute.xlu0 %694
  %v696 = vmul.f32 %v691, %v608
  %v697 = vmul.f32 %v688, %v693
  %v698 = vadd.f32 %v696, %v697
  %v699 = vtanh.pop %v698
  %v700 = vmul.f32 %v695, %v699
  %v701 = vmax.f32 %v611, %v700
  %702 = vmatprep.subr.mxu0 0.0
  %703 = vmatpush1.msra.mxu0 %v327
  %704 = vmatprep.subr.mxu0 0.0
  %705 = vmatpush1.msra.mxu0 %v328
  %706 = vmatprep.subr.mxu0 0.0
  %707 = vmatpush1.msra.mxu0 %v329
  %708 = vmatprep.subr.mxu0 0.0
  %709 = vmatpush1.msra.mxu0 %v330
  %710 = vmatprep.subr.mxu0 0.0
  %711 = vmatpush1.msra.mxu0 %v331
  %712 = vmatprep.subr.mxu0 0.0
  %713 = vmatpush1.msra.mxu0 %v332
  %714 = vmatprep.subr.mxu0 0.0
  %715 = vmatpush1.msra.mxu0 %v333
  %716 = vmatprep.subr.mxu0 0.0
  %717 = vmatpush1.msra.mxu0 %v334
  %718 = vmatprep.subr.mxu0 0.0
  %719 = vmatpush1.msra.mxu0 %v335
  %720 = vmatprep.subr.mxu0 0.0
  %721 = vmatpush1.msra.mxu0 %v336
  %722 = vmatprep.subr.mxu0 0.0
  %723 = vmatpush1.msra.mxu0 %v337
  %724 = vmatprep.subr.mxu0 0.0
  %725 = vmatpush1.msra.mxu0 %v338
  %726 = vmatprep.subr.mxu0 0.0
  %727 = vmatpush1.msra.mxu0 %v339
  %728 = vmatprep.subr.mxu0 0.0
  %729 = vmatpush1.msra.mxu0 %v340
  %730 = vmatprep.subr.mxu0 0.0
  %731 = vmatpush1.msra.mxu0 %v341
  %732 = vmatprep.subr.mxu0 0.0
  %733 = vmatpush1.msra.mxu0 %v342
  %734 = vmatprep.subr.mxu0 0.0
  %735 = vmatpush1.msra.mxu0 0.0
  %736 = vmatprep.subr.mxu0 0.0
  %737 = vmatpush1.msra.mxu0 0.0
  %738 = vmatprep.subr.mxu0 0.0
  %739 = vmatpush1.msra.mxu0 0.0
  %740 = vmatprep.subr.mxu0 0.0
  %741 = vmatpush1.msra.mxu0 0.0
  %742 = vmatprep.subr.mxu0 0.0
  %743 = vmatpush1.msra.mxu0 0.0
  %744 = vmatprep.subr.mxu0 0.0
  %745 = vmatpush1.msra.mxu0 0.0
  %746 = vmatprep.subr.mxu0 0.0
  %747 = vmatpush1.msra.mxu0 0.0
  %748 = vmatprep.subr.mxu0 0.0
  %749 = vmatpush1.msra.mxu0 0.0
  %750 = vmatprep.subr.mxu0 0.0
  %751 = vmatpush1.msra.mxu0 0.0
  %752 = vmatprep.subr.mxu0 0.0
  %753 = vmatpush1.msra.mxu0 0.0
  %754 = vmatprep.subr.mxu0 0.0
  %755 = vmatpush1.msra.mxu0 0.0
  %756 = vmatprep.subr.mxu0 0.0
  %757 = vmatpush1.msra.mxu0 0.0
  %758 = vmatprep.subr.mxu0 0.0
  %759 = vmatpush1.msra.mxu0 0.0
  %760 = vmatprep.subr.mxu0 0.0
  %761 = vmatpush1.msra.mxu0 0.0
  %762 = vmatprep.subr.mxu0 0.0
  %763 = vmatpush1.msra.mxu0 0.0
  %764 = vmatprep.subr.mxu0 0.0
  %765 = vmatpush1.msra.mxu0 0.0
  %766 = vmatprep.mubr.f32.mxu0 0.0
  %767 = vmatmul.mubr.f32.gmra.mrb[0].mxu0 %v700
  %v768 = vpop.f32.mrb[0].mxu0
  %v769 = vadd.f32 0.0, %v768
  %v770 = vpop.f32.mrb[0].mxu0
  %771 = vdwg.mxu0
  %v772 = vadd.f32 %v309, %v769
  %v773 = vxor.u32 %v772, 2147483648
  %v774 = vmul.f32 %v773, 1.442695
  %v775 = vpow.pop %v774
  %v776 = vadd.f32 %v775, 1.0
  %v777 = vrcp.pop %v776
  %v778 = vmul.f32 1.0, %v777
  %v779 = vtanh.pop %v772
  %780 = vrot.lane.b32.xlu0 %v778, 96
  %v781 = vpop.permute.xlu0 %780
  %782 = vrot.lane.b32.xlu0 %v779, 64
  %v783 = vpop.permute.xlu0 %782
  %784 = vrot.lane.b32.xlu0 %v778, 32
  %v785 = vpop.permute.xlu0 %784
  %v786 = vmul.f32 %v781, %v698
  %v787 = vmul.f32 %v778, %v783
  %v788 = vadd.f32 %v786, %v787
  %v789 = vtanh.pop %v788
  %v790 = vmul.f32 %v785, %v789
  %v791 = vmax.f32 %v701, %v790
  %792 = vmatprep.subr.mxu0 0.0
  %793 = vmatpush1.msra.mxu0 %v327
  %794 = vmatprep.subr.mxu0 0.0
  %795 = vmatpush1.msra.mxu0 %v328
  %796 = vmatprep.subr.mxu0 0.0
  %797 = vmatpush1.msra.mxu0 %v329
  %798 = vmatprep.subr.mxu0 0.0
  %799 = vmatpush1.msra.mxu0 %v330
  %800 = vmatprep.subr.mxu0 0.0
  %801 = vmatpush1.msra.mxu0 %v331
  %802 = vmatprep.subr.mxu0 0.0
  %803 = vmatpush1.msra.mxu0 %v332
  %804 = vmatprep.subr.mxu0 0.0
  %805 = vmatpush1.msra.mxu0 %v333
  %806 = vmatprep.subr.mxu0 0.0
  %807 = vmatpush1.msra.mxu0 %v334
  %808 = vmatprep.subr.mxu0 0.0
  %809 = vmatpush1.msra.mxu0 %v335
  %810 = vmatprep.subr.mxu0 0.0
  %811 = vmatpush1.msra.mxu0 %v336
  %812 = vmatprep.subr.mxu0 0.0
  %813 = vmatpush1.msra.mxu0 %v337
  %814 = vmatprep.subr.mxu0 0.0
  %815 = vmatpush1.msra.mxu0 %v338
  %816 = vmatprep.subr.mxu0 0.0
  %817 = vmatpush1.msra.mxu0 %v339
  %818 = vmatprep.subr.mxu0 0.0
  %819 = vmatpush1.msra.mxu0 %v340
  %820 = vmatprep.subr.mxu0 0.0
  %821 = vmatpush1.msra.mxu0 %v341
  %822 = vmatprep.subr.mxu0 0.0
  %823 = vmatpush1.msra.mxu0 %v342
  %824 = vmatprep.subr.mxu0 0.0
  %825 = vmatpush1.msra.mxu0 0.0
  %826 = vmatprep.subr.mxu0 0.0
  %827 = vmatpush1.msra.mxu0 0.0
  %828 = vmatprep.subr.mxu0 0.0
  %829 = vmatpush1.msra.mxu0 0.0
  %830 = vmatprep.subr.mxu0 0.0
  %831 = vmatpush1.msra.mxu0 0.0
  %832 = vmatprep.subr.mxu0 0.0
  %833 = vmatpush1.msra.mxu0 0.0
  %834 = vmatprep.subr.mxu0 0.0
  %835 = vmatpush1.msra.mxu0 0.0
  %836 = vmatprep.subr.mxu0 0.0
  %837 = vmatpush1.msra.mxu0 0.0
  %838 = vmatprep.subr.mxu0 0.0
  %839 = vmatpush1.msra.mxu0 0.0
  %840 = vmatprep.subr.mxu0 0.0
  %841 = vmatpush1.msra.mxu0 0.0
  %842 = vmatprep.subr.mxu0 0.0
  %843 = vmatpush1.msra.mxu0 0.0
  %844 = vmatprep.subr.mxu0 0.0
  %845 = vmatpush1.msra.mxu0 0.0
  %846 = vmatprep.subr.mxu0 0.0
  %847 = vmatpush1.msra.mxu0 0.0
  %848 = vmatprep.subr.mxu0 0.0
  %849 = vmatpush1.msra.mxu0 0.0
  %850 = vmatprep.subr.mxu0 0.0
  %851 = vmatpush1.msra.mxu0 0.0
  %852 = vmatprep.subr.mxu0 0.0
  %853 = vmatpush1.msra.mxu0 0.0
  %854 = vmatprep.subr.mxu0 0.0
  %855 = vmatpush1.msra.mxu0 0.0
  %856 = vmatprep.mubr.f32.mxu0 0.0
  %857 = vmatmul.mubr.f32.gmra.mrb[0].mxu0 %v790
  %v858 = vpop.f32.mrb[0].mxu0
  %v859 = vadd.f32 0.0, %v858
  %v860 = vpop.f32.mrb[0].mxu0
  %861 = vdwg.mxu0
  %v862 = vadd.f32 %v314, %v859
  %v863 = vxor.u32 %v862, 2147483648
  %v864 = vmul.f32 %v863, 1.442695
  %v865 = vpow.pop %v864
  %v866 = vadd.f32 %v865, 1.0
  %v867 = vrcp.pop %v866
  %v868 = vmul.f32 1.0, %v867
  %v869 = vtanh.pop %v862
  %870 = vrot.lane.b32.xlu0 %v868, 96
  %v871 = vpop.permute.xlu0 %870
  %872 = vrot.lane.b32.xlu0 %v869, 64
  %v873 = vpop.permute.xlu0 %872
  %874 = vrot.lane.b32.xlu0 %v868, 32
  %v875 = vpop.permute.xlu0 %874
  %v876 = vmul.f32 %v871, %v788
  %v877 = vmul.f32 %v868, %v873
  %v878 = vadd.f32 %v876, %v877
  %v879 = vtanh.pop %v878
  %v880 = vmul.f32 %v875, %v879
  %v881 = vmax.f32 %v791, %v880
  %882 = vmatprep.subr.mxu0 0.0
  %883 = vmatpush1.msra.mxu0 %v327
  %884 = vmatprep.subr.mxu0 0.0
  %885 = vmatpush1.msra.mxu0 %v328
  %886 = vmatprep.subr.mxu0 0.0
  %887 = vmatpush1.msra.mxu0 %v329
  %888 = vmatprep.subr.mxu0 0.0
  %889 = vmatpush1.msra.mxu0 %v330
  %890 = vmatprep.subr.mxu0 0.0
  %891 = vmatpush1.msra.mxu0 %v331
  %892 = vmatprep.subr.mxu0 0.0
  %893 = vmatpush1.msra.mxu0 %v332
  %894 = vmatprep.subr.mxu0 0.0
  %895 = vmatpush1.msra.mxu0 %v333
  %896 = vmatprep.subr.mxu0 0.0
  %897 = vmatpush1.msra.mxu0 %v334
  %898 = vmatprep.subr.mxu0 0.0
  %899 = vmatpush1.msra.mxu0 %v335
  %900 = vmatprep.subr.mxu0 0.0
  %901 = vmatpush1.msra.mxu0 %v336
  %902 = vmatprep.subr.mxu0 0.0
  %903 = vmatpush1.msra.mxu0 %v337
  %904 = vmatprep.subr.mxu0 0.0
  %905 = vmatpush1.msra.mxu0 %v338
  %906 = vmatprep.subr.mxu0 0.0
  %907 = vmatpush1.msra.mxu0 %v339
  %908 = vmatprep.subr.mxu0 0.0
  %909 = vmatpush1.msra.mxu0 %v340
  %910 = vmatprep.subr.mxu0 0.0
  %911 = vmatpush1.msra.mxu0 %v341
  %912 = vmatprep.subr.mxu0 0.0
  %913 = vmatpush1.msra.mxu0 %v342
  %914 = vmatprep.subr.mxu0 0.0
  %915 = vmatpush1.msra.mxu0 0.0
  %916 = vmatprep.subr.mxu0 0.0
  %917 = vmatpush1.msra.mxu0 0.0
  %918 = vmatprep.subr.mxu0 0.0
  %919 = vmatpush1.msra.mxu0 0.0
  %920 = vmatprep.subr.mxu0 0.0
  %921 = vmatpush1.msra.mxu0 0.0
  %922 = vmatprep.subr.mxu0 0.0
  %923 = vmatpush1.msra.mxu0 0.0
  %924 = vmatprep.subr.mxu0 0.0
  %925 = vmatpush1.msra.mxu0 0.0
  %926 = vmatprep.subr.mxu0 0.0
  %927 = vmatpush1.msra.mxu0 0.0
  %928 = vmatprep.subr.mxu0 0.0
  %929 = vmatpush1.msra.mxu0 0.0
  %930 = vmatprep.subr.mxu0 0.0
  %931 = vmatpush1.msra.mxu0 0.0
  %932 = vmatprep.subr.mxu0 0.0
  %933 = vmatpush1.msra.mxu0 0.0
  %934 = vmatprep.subr.mxu0 0.0
  %935 = vmatpush1.msra.mxu0 0.0
  %936 = vmatprep.subr.mxu0 0.0
  %937 = vmatpush1.msra.mxu0 0.0
  %938 = vmatprep.subr.mxu0 0.0
  %939 = vmatpush1.msra.mxu0 0.0
  %940 = vmatprep.subr.mxu0 0.0
  %941 = vmatpush1.msra.mxu0 0.0
  %942 = vmatprep.subr.mxu0 0.0
  %943 = vmatpush1.msra.mxu0 0.0
  %944 = vmatprep.subr.mxu0 0.0
  %945 = vmatpush1.msra.mxu0 0.0
  %946 = vmatprep.mubr.f32.mxu0 0.0
  %947 = vmatmul.mubr.f32.gmra.mrb[0].mxu0 %v880
  %v948 = vpop.f32.mrb[0].mxu0
  %v949 = vadd.f32 0.0, %v948
  %v950 = vpop.f32.mrb[0].mxu0
  %951 = vdwg.mxu0
  %v952 = vadd.f32 %v319, %v949
  %v953 = vxor.u32 %v952, 2147483648
  %v954 = vmul.f32 %v953, 1.442695
  %v955 = vpow.pop %v954
  %v956 = vadd.f32 %v955, 1.0
  %v957 = vrcp.pop %v956
  %v958 = vmul.f32 1.0, %v957
  %v959 = vtanh.pop %v952
  %960 = vrot.lane.b32.xlu0 %v958, 96
  %v961 = vpop.permute.xlu0 %960
  %962 = vrot.lane.b32.xlu0 %v959, 64
  %v963 = vpop.permute.xlu0 %962
  %964 = vrot.lane.b32.xlu0 %v958, 32
  %v965 = vpop.permute.xlu0 %964
  %v966 = vmul.f32 %v961, %v878
  %v967 = vmul.f32 %v958, %v963
  %v968 = vadd.f32 %v966, %v967
  %v969 = vtanh.pop %v968
  %v970 = vmul.f32 %v965, %v969
  %v971 = vmax.f32 %v881, %v970
  %972 = vmatprep.subr.mxu0 0.0
  %973 = vmatpush1.msra.mxu0 %v327
  %974 = vmatprep.subr.mxu0 0.0
  %975 = vmatpush1.msra.mxu0 %v328
  %976 = vmatprep.subr.mxu0 0.0
  %977 = vmatpush1.msra.mxu0 %v329
  %978 = vmatprep.subr.mxu0 0.0
  %979 = vmatpush1.msra.mxu0 %v330
  %980 = vmatprep.subr.mxu0 0.0
  %981 = vmatpush1.msra.mxu0 %v331
  %982 = vmatprep.subr.mxu0 0.0
  %983 = vmatpush1.msra.mxu0 %v332
  %984 = vmatprep.subr.mxu0 0.0
  %985 = vmatpush1.msra.mxu0 %v333
  %986 = vmatprep.subr.mxu0 0.0
  %987 = vmatpush1.msra.mxu0 %v334
  %988 = vmatprep.subr.mxu0 0.0
  %989 = vmatpush1.msra.mxu0 %v335
  %990 = vmatprep.subr.mxu0 0.0
  %991 = vmatpush1.msra.mxu0 %v336
  %992 = vmatprep.subr.mxu0 0.0
  %993 = vmatpush1.msra.mxu0 %v337
  %994 = vmatprep.subr.mxu0 0.0
  %995 = vmatpush1.msra.mxu0 %v338
  %996 = vmatprep.subr.mxu0 0.0
  %997 = vmatpush1.msra.mxu0 %v339
  %998 = vmatprep.subr.mxu0 0.0
  %999 = vmatpush1.msra.mxu0 %v340
  %1000 = vmatprep.subr.mxu0 0.0
  %1001 = vmatpush1.msra.mxu0 %v341
  %1002 = vmatprep.subr.mxu0 0.0
  %1003 = vmatpush1.msra.mxu0 %v342
  %1004 = vmatprep.subr.mxu0 0.0
  %1005 = vmatpush1.msra.mxu0 0.0
  %1006 = vmatprep.subr.mxu0 0.0
  %1007 = vmatpush1.msra.mxu0 0.0
  %1008 = vmatprep.subr.mxu0 0.0
  %1009 = vmatpush1.msra.mxu0 0.0
  %1010 = vmatprep.subr.mxu0 0.0
  %1011 = vmatpush1.msra.mxu0 0.0
  %1012 = vmatprep.subr.mxu0 0.0
  %1013 = vmatpush1.msra.mxu0 0.0
  %1014 = vmatprep.subr.mxu0 0.0
  %1015 = vmatpush1.msra.mxu0 0.0
  %1016 = vmatprep.subr.mxu0 0.0
  %1017 = vmatpush1.msra.mxu0 0.0
  %1018 = vmatprep.subr.mxu0 0.0
  %1019 = vmatpush1.msra.mxu0 0.0
  %1020 = vmatprep.subr.mxu0 0.0
  %1021 = vmatpush1.msra.mxu0 0.0
  %1022 = vmatprep.subr.mxu0 0.0
  %1023 = vmatpush1.msra.mxu0 0.0
  %1024 = vmatprep.subr.mxu0 0.0
  %1025 = vmatpush1.msra.mxu0 0.0
  %1026 = vmatprep.subr.mxu0 0.0
  %1027 = vmatpush1.msra.mxu0 0.0
  %1028 = vmatprep.subr.mxu0 0.0
  %1029 = vmatpush1.msra.mxu0 0.0
  %1030 = vmatprep.subr.mxu0 0.0
  %1031 = vmatpush1.msra.mxu0 0.0
  %1032 = vmatprep.subr.mxu0 0.0
  %1033 = vmatpush1.msra.mxu0 0.0
  %1034 = vmatprep.subr.mxu0 0.0
  %1035 = vmatpush1.msra.mxu0 0.0
  %1036 = vmatprep.mubr.f32.mxu0 0.0
  %1037 = vmatmul.mubr.f32.gmra.mrb[0].mxu0 %v970
  %v1038 = vpop.f32.mrb[0].mxu0
  %v1039 = vadd.f32 0.0, %v1038
  %v1040 = vpop.f32.mrb[0].mxu0
  %1041 = vdwg.mxu0
  %v1042 = vadd.f32 %v324, %v1039
  %v1043 = vxor.u32 %v1042, 2147483648
  %v1044 = vmul.f32 %v1043, 1.442695
  %v1045 = vpow.pop %v1044
  %v1046 = vadd.f32 %v1045, 1.0
  %v1047 = vrcp.pop %v1046
  %v1048 = vmul.f32 1.0, %v1047
  %v1049 = vtanh.pop %v1042
  %1050 = vrot.lane.b32.xlu0 %v1048, 96
  %v1051 = vpop.permute.xlu0 %1050
  %1052 = vrot.lane.b32.xlu0 %v1049, 64
  %v1053 = vpop.permute.xlu0 %1052
  %1054 = vrot.lane.b32.xlu0 %v1048, 32
  %v1055 = vpop.permute.xlu0 %1054
  %v1056 = vmul.f32 %v1051, %v968
  %v1057 = vmul.f32 %v1048, %v1053
  %v1058 = vadd.f32 %v1056, %v1057
  %v1059 = vtanh.pop %v1058
  %v1060 = vmul.f32 %v1055, %v1059
  %v1061 = vmax.f32 %v971, %v1060
  %v1062 = vld [vmem:[%s5] sm:$0xff]
  %v1063 = vld [vmem:[%s5 + $0x8] sm:$0xff]
  %v1064 = vld [vmem:[%s5 + $0x10] sm:$0xff]
  %v1065 = vld [vmem:[%s5 + $0x18] sm:$0xff]
  %v1066 = vld [vmem:[%s5 + $0x20] sm:$0xff]
  %v1067 = vld [vmem:[%s5 + $0x28] sm:$0xff]
  %v1068 = vld [vmem:[%s5 + $0x30] sm:$0xff]
  %v1069 = vld [vmem:[%s5 + $0x38] sm:$0xff]
  %v1070 = vld [vmem:[%s5 + $0x40] sm:$0xff]
  %v1071 = vld [vmem:[%s5 + $0x48] sm:$0xff]
  %v1072 = vld [vmem:[%s5 + $0x50] sm:$0xff]
  %v1073 = vld [vmem:[%s5 + $0x58] sm:$0xff]
  %v1074 = vld [vmem:[%s5 + $0x60] sm:$0xff]
  %v1075 = vld [vmem:[%s5 + $0x68] sm:$0xff]
  %v1076 = vld [vmem:[%s5 + $0x70] sm:$0xff]
  %v1077 = vld [vmem:[%s5 + $0x78] sm:$0xff]
  %v1078 = vld [vmem:[#allocation2] sm:$0x1]
  %v1080 = vlaneseq
  %v1081 = vshrl.u32 %v1080, 7
  %v1082 = vsub.s32 0, %v1081
  %v1083 = vrot.slane %v1078, %v1082
  %1085 = vmatprep.subr.mxu0 0.0
  %1086 = vmatpush1.msra.mxu0 %v1062
  %1087 = vmatprep.subr.mxu0 0.0
  %1088 = vmatpush1.msra.mxu0 %v1063
  %1089 = vmatprep.subr.mxu0 0.0
  %1090 = vmatpush1.msra.mxu0 %v1064
  %1091 = vmatprep.subr.mxu0 0.0
  %1092 = vmatpush1.msra.mxu0 %v1065
  %1093 = vmatprep.subr.mxu0 0.0
  %1094 = vmatpush1.msra.mxu0 %v1066
  %1095 = vmatprep.subr.mxu0 0.0
  %1096 = vmatpush1.msra.mxu0 %v1067
  %1097 = vmatprep.subr.mxu0 0.0
  %1098 = vmatpush1.msra.mxu0 %v1068
  %1099 = vmatprep.subr.mxu0 0.0
  %1100 = vmatpush1.msra.mxu0 %v1069
  %1101 = vmatprep.subr.mxu0 0.0
  %1102 = vmatpush1.msra.mxu0 %v1070
  %1103 = vmatprep.subr.mxu0 0.0
  %1104 = vmatpush1.msra.mxu0 %v1071
  %1105 = vmatprep.subr.mxu0 0.0
  %1106 = vmatpush1.msra.mxu0 %v1072
  %1107 = vmatprep.subr.mxu0 0.0
  %1108 = vmatpush1.msra.mxu0 %v1073
  %1109 = vmatprep.subr.mxu0 0.0
  %1110 = vmatpush1.msra.mxu0 %v1074
  %1111 = vmatprep.subr.mxu0 0.0
  %1112 = vmatpush1.msra.mxu0 %v1075
  %1113 = vmatprep.subr.mxu0 0.0
  %1114 = vmatpush1.msra.mxu0 %v1076
  %1115 = vmatprep.subr.mxu0 0.0
  %1116 = vmatpush1.msra.mxu0 %v1077
  %1117 = vmatprep.subr.mxu0 0.0
  %1118 = vmatpush1.msra.mxu0 0.0
  %1119 = vmatprep.subr.mxu0 0.0
  %1120 = vmatpush1.msra.mxu0 0.0
  %1121 = vmatprep.subr.mxu0 0.0
  %1122 = vmatpush1.msra.mxu0 0.0
  %1123 = vmatprep.subr.mxu0 0.0
  %1124 = vmatpush1.msra.mxu0 0.0
  %1125 = vmatprep.subr.mxu0 0.0
  %1126 = vmatpush1.msra.mxu0 0.0
  %1127 = vmatprep.subr.mxu0 0.0
  %1128 = vmatpush1.msra.mxu0 0.0
  %1129 = vmatprep.subr.mxu0 0.0
  %1130 = vmatpush1.msra.mxu0 0.0
  %1131 = vmatprep.subr.mxu0 0.0
  %1132 = vmatpush1.msra.mxu0 0.0
  %1133 = vmatprep.subr.mxu0 0.0
  %1134 = vmatpush1.msra.mxu0 0.0
  %1135 = vmatprep.subr.mxu0 0.0
  %1136 = vmatpush1.msra.mxu0 0.0
  %1137 = vmatprep.subr.mxu0 0.0
  %1138 = vmatpush1.msra.mxu0 0.0
  %1139 = vmatprep.subr.mxu0 0.0
  %1140 = vmatpush1.msra.mxu0 0.0
  %1141 = vmatprep.subr.mxu0 0.0
  %1142 = vmatpush1.msra.mxu0 0.0
  %1143 = vmatprep.subr.mxu0 0.0
  %1144 = vmatpush1.msra.mxu0 0.0
  %1145 = vmatprep.subr.mxu0 0.0
  %1146 = vmatpush1.msra.mxu0 0.0
  %1147 = vmatprep.subr.mxu0 0.0
  %1148 = vmatpush1.msra.mxu0 0.0
  %1149 = vmatprep.mubr.f32.mxu0 0.0
  %1150 = vmatmul.mubr.f32.gmra.mrb[0].mxu0 %v1061
  %v1151 = vpop.f32.mrb[0].mxu0
  %v1152 = vadd.f32 %v1083, %v1151
  %v1153 = vpop.f32.mrb[0].mxu0
  %1154 = vdwg.mxu0
  %v1155 = vxor.u32 %v1152, 2147483648
  %v1156 = vmul.f32 %v1155, 1.442695
  %v1157 = vpow.pop %v1156
  %v1158 = vadd.f32 %v1157, 1.0
  %v1159 = vrcp.pop %v1158
  %v1160 = vmul.f32 1.0, %v1159
  %vm1161 = vcmask 7168
  %1162 = vst.msk [vmem:[%s7] sm:$0xff] %vm1161, %v1160
  // Predicated region
  $region30: #{lstm_forward.1} parent=0 // pred_check
    _
  $region31: #{lstm_forward.1} parent=0 // pred_check_branch
    %1164 = sbr.rel (0) target = $region33
  $region32: #{lstm_forward.1} parent=0 // pred_region
    _
  $region33: #{lstm_forward.1} parent=0 // pred_fallthru
    _
  // Predicated region
  $region34: #{lstm_forward.1} parent=0 // pred_check
    _
  $region35: #{lstm_forward.1} parent=0 // pred_check_branch
    %1166 = sbr.rel (0) target = $region37
  $region36: #{lstm_forward.1} parent=0 // pred_region
    _
  $region37: #{lstm_forward.1} parent=0 // pred_fallthru
    _

</llo_original>
